<compile_context>
chip_gen: v7x
topology: tpu7x:2x2x1
jax: 0.10.0
libtpu: 0.0.40
codegen_flags: <defaults>
</compile_context>

<pallas_src>
import numpy as np
import jax
import jax.numpy as jnp
from jax.experimental import pallas as pl
from jax.experimental.pallas import tpu as pltpu


def _round_up(v, m):
    return ((v + m - 1) // m) * m


def _detect_vmem_capacity_bytes():
    """Physical VMEM per TensorCore; conservative 64 MiB default (safe on every gen)."""
    try:
        info = pltpu.get_tpu_info()
        cap = getattr(info, "vmem_capacity_bytes", None)
        if cap:
            return int(cap)
    except Exception:
        pass
    try:
        kind = jax.devices()[0].device_kind.lower()
        if "v7" in kind:
            return 64 * 1024 * 1024
        if "v4" in kind or "v5" in kind or "v6" in kind:
            return 128 * 1024 * 1024
    except Exception:
        pass
    return 64 * 1024 * 1024


def _detect_is_v5():
    try:
        return "v5" in jax.devices()[0].device_kind.lower()
    except Exception:
        return False


class Lambda:
    """JAX-side analogue of the PyTorch Lambda(nn.Module): forward just applies `func`."""

    def __init__(self, func):
        self.func = func

    def __call__(self, *args, **kwargs):
        return self.func(*args, **kwargs)


def _fused_embed_kernel(idx_ref, x_ref, featsel_ref, whi_ref, wmid_ref, wlo_ref, p_ref, out_ref):
    """One batch tile of the fused embedding forward.

    idx_ref:     (TB, nCp)      f32  adjusted categorical ids (id + table row offset)
    x_ref:       (TB, Dp)       f32  raw input rows (continuous cols used; cat cols hit zero rows)
    featsel_ref: (nCp, sumCp)   f32  0/1 feature -> table-row-block selector
    w*_ref:      (sumCp, Eout)  bf16 hi/mid/lo planes of the stacked tables (sum == f32 tables),
                                     columns pre-placed at final output positions
    p_ref:       (Dp, Eout)     f32  0/1 placement of continuous columns into output positions
    out_ref:     (TB, Eout)     f32
    """
    hi = jax.lax.Precision.HIGHEST
    # Broadcast each feature's adjusted id over its own row block -> (TB, sumCp).
    # Ids are exact integers (< 2**24), so HIGHEST keeps `sel` exactly integer-valued.
    sel = jnp.dot(idx_ref[...], featsel_ref[...],
                  precision=hi, preferred_element_type=jnp.float32)
    iota = jax.lax.broadcasted_iota(jnp.int32, sel.shape, 1)
    onehot = jnp.where(sel.astype(jnp.int32) == iota,
                       jnp.float32(1.0), jnp.float32(0.0)).astype(jnp.bfloat16)
    # Three single-pass bf16 MXU matmuls reconstruct the f32 gather exactly
    # (0/1 LHS is bf16-exact; W_hi + W_mid + W_lo == W to ~1e-7 relative).
    emb = jnp.dot(onehot, whi_ref[...], preferred_element_type=jnp.float32)
    emb = emb + jnp.dot(onehot, wmid_ref[...], preferred_element_type=jnp.float32)
    emb = emb + jnp.dot(onehot, wlo_ref[...], preferred_element_type=jnp.float32)
    # Continuous columns scattered to their output positions (tiny K; exact for 0/1 P).
    cont = jnp.dot(x_ref[...], p_ref[...], precision=hi, preferred_element_type=jnp.float32)
    out_ref[...] = emb + cont


class EmbeddingGeneratorPallas:
    """JAX/Pallas re-implementation of the mixed continuous/categorical embedding forward."""

    def __init__(self, input_dim, cat_dims, cat_idxs, cat_emb_dim=[], *, key=None,
                 batch_tile=512):
        self.input_dim = int(input_dim)
        self.batch_tile = int(batch_tile)
        if cat_dims == [] or cat_idxs == []:
            self.skip_embedding = True
            self.post_embed_dim = self.input_dim
            return
        self.skip_embedding = False

        if isinstance(cat_emb_dim, list) and len(cat_emb_dim) == 0:
            cat_emb_dim = [min(600, round(1.6 * n ** 0.56)) for n in cat_dims]
        if isinstance(cat_emb_dim, int):
            cat_emb_dims = [cat_emb_dim] * len(cat_idxs)
        else:
            cat_emb_dims = list(cat_emb_dim)
        if len(cat_emb_dims) != len(cat_dims):
            raise ValueError("cat_emb_dim and cat_dims must be lists of same length")
        self.post_embed_dim = int(self.input_dim + int(np.sum(cat_emb_dims)) - len(cat_emb_dims))

        order = np.argsort(cat_idxs)
        self.cat_dims = [int(cat_dims[i]) for i in order]
        self.cat_emb_dims = [int(cat_emb_dims[i]) for i in order]
        self.sorted_cat_idxs = [int(cat_idxs[i]) for i in order]
        self.n_cat = len(self.cat_dims)

        self.continuous_idx = np.ones(self.input_dim, dtype=bool)
        self.continuous_idx[np.array(cat_idxs)] = False

        # Deterministic N(0, 1) init (matches torch.nn.Embedding's default init).
        if key is None:
            key = jax.random.PRNGKey(0)
        keys = jax.random.split(key, self.n_cat)
        self.tables_list = [
            jax.random.normal(k, (cd, ed), dtype=jnp.float32)
            for k, cd, ed in zip(keys, self.cat_dims, self.cat_emb_dims)
        ]

        # ---- Packed layout for the fused kernel --------------------------------------
        row_off = np.concatenate([[0], np.cumsum(self.cat_dims)]).astype(np.int64)
        sum_c = int(row_off[-1])
        if sum_c >= (1 << 24):
            # Adjusted ids ride through an f32 matmul; they must stay exact integers.
            raise ValueError("sum(cat_dims) must be < 2**24 for the fused one-hot path")
        self.row_offsets = row_off[:-1].astype(np.int32)              # (n_cat,)

        self._vmem_capacity = _detect_vmem_capacity_bytes()
        self._vmem_limit = int(0.85 * self._vmem_capacity)            # scoped-VMEM limit we set
        self._vmem_budget = int(0.80 * self._vmem_limit)              # tile-sizing budget

        k_round = 128 if _detect_is_v5() else 256                     # MXU cadence: 128 on v5*
        self.sumC_pad = _round_up(max(sum_c, 1), k_round)
        self.nC_pad = _round_up(self.n_cat, 8)
        self.D_pad = _round_up(self.input_dim, 8)
        self.E_out = _round_up(self.post_embed_dim, 128)              # lane-dense output width

        W = np.zeros((self.sumC_pad, self.E_out), np.float32)
        P = np.zeros((self.D_pad, self.E_out), np.float32)
        out_col = 0
        c = 0
        for i in range(self.input_dim):
            if self.continuous_idx[i]:
                P[i, out_col] = 1.0
                out_col += 1
            else:
                t = np.asarray(self.tables_list[c])
                r0 = int(self.row_offsets[c])
                W[r0:r0 + t.shape[0], out_col:out_col + t.shape[1]] = t
                out_col += t.shape[1]
                c += 1
        assert out_col == self.post_embed_dim

        featsel = np.zeros((self.nC_pad, self.sumC_pad), np.float32)
        for f in range(self.n_cat):
            r0 = int(self.row_offsets[f])
            featsel[f, r0:r0 + self.cat_dims[f]] = 1.0

        # Split W into three bf16 planes whose f32 sum reconstructs W (single-pass bf16 MXU).
        Wj = jnp.asarray(W)
        w_hi = Wj.astype(jnp.bfloat16)
        r1 = Wj - w_hi.astype(jnp.float32)
        w_mid = r1.astype(jnp.bfloat16)
        r2 = r1 - w_mid.astype(jnp.float32)
        w_lo = r2.astype(jnp.bfloat16)

        self.W_hi = w_hi
        self.W_mid = w_mid
        self.W_lo = w_lo
        self.P = jnp.asarray(P)
        self.featsel = jnp.asarray(featsel)
        self.row_offsets_j = jnp.asarray(self.row_offsets)
        self._cat_cols = jnp.asarray(self.sorted_cat_idxs, dtype=jnp.int32)

    # ---- VMEM budgeting -----------------------------------------------------------
    def _vmem_bytes(self, tb):
        dbl_io = 2 * tb * (self.nC_pad + self.D_pad + self.E_out) * 4       # double-buffered I/O
        resident = 2 * (self.nC_pad * self.sumC_pad * 4                     # featsel (f32)
                        + 3 * self.sumC_pad * self.E_out * 2                # W hi/mid/lo (bf16)
                        + self.D_pad * self.E_out * 4)                      # P (f32)
        interm = tb * (self.sumC_pad * (4 + 4 + 2)                          # sel, sel_i, onehot
                       + 3 * self.E_out * 4)                                # emb/cont/out temps
        return int(1.25 * (dbl_io + resident + interm))                     # compiler headroom

    def _choose_batch_tile(self, batch):
        budget = self._vmem_budget
        if batch <= 128:
            gran = 8
            tb = max(8, _round_up(min(self.batch_tile, batch), 8))
        else:
            gran = 128
            target = max(gran, min(_round_up(self.batch_tile, gran), _round_up(batch, gran)))
            n_tiles = -(-batch // target)
            if n_tiles < 2 and batch >= 2 * gran:
                n_tiles = 2           # >= 2 grid steps so both v7x TensorCores get work
            tb = _round_up(-(-batch // n_tiles), gran)
        while tb > gran and self._vmem_bytes(tb) > budget:
            tb = max(gran, _round_up(tb // 2, gran))
        return tb

    # ---- forward --------------------------------------------------------------------
    def __call__(self, x, *, return_padded=False):
        """x: (batch, input_dim) float32 -> (batch, post_embed_dim) float32.

        Note: out-of-range / negative categorical ids yield an all-zero embedding row
        (PyTorch's nn.Embedding would raise instead).
        """
        if self.skip_embedding:
            return jnp.asarray(x, dtype=jnp.float32)
        x = jnp.asarray(x, dtype=jnp.float32)
        B = x.shape[0]

        ids = x[:, self._cat_cols].astype(jnp.int32)                        # (B, n_cat)
        idx_adj = (ids + self.row_offsets_j).astype(jnp.float32)            # (B, n_cat)
        if self.nC_pad != self.n_cat:
            idx_adj = jnp.pad(idx_adj, ((0, 0), (0, self.nC_pad - self.n_cat)))
        xw = x
        if self.D_pad != self.input_dim:
            xw = jnp.pad(xw, ((0, 0), (0, self.D_pad - self.input_dim)))

        tb = self._choose_batch_tile(B)
        B_pad = _round_up(B, tb)
        if B_pad != B:
            idx_adj = jnp.pad(idx_adj, ((0, B_pad - B), (0, 0)))
            xw = jnp.pad(xw, ((0, B_pad - B), (0, 0)))

        out = pl.pallas_call(
            _fused_embed_kernel,
            out_shape=jax.ShapeDtypeStruct((B_pad, self.E_out), jnp.float32),
            grid=(B_pad // tb,),
            in_specs=[
                pl.BlockSpec((tb, self.nC_pad), lambda i: (i, 0)),
                pl.BlockSpec((tb, self.D_pad), lambda i: (i, 0)),
                pl.BlockSpec((self.nC_pad, self.sumC_pad), lambda i: (0, 0)),
                pl.BlockSpec((self.sumC_pad, self.E_out), lambda i: (0, 0)),
                pl.BlockSpec((self.sumC_pad, self.E_out), lambda i: (0, 0)),
                pl.BlockSpec((self.sumC_pad, self.E_out), lambda i: (0, 0)),
                pl.BlockSpec((self.D_pad, self.E_out), lambda i: (0, 0)),
            ],
            out_specs=pl.BlockSpec((tb, self.E_out), lambda i: (i, 0)),
            compiler_params=pltpu.CompilerParams(
                dimension_semantics=("parallel",),
                vmem_limit_bytes=self._vmem_limit,
            ),
        )(idx_adj, xw, self.featsel, self.W_hi, self.W_mid, self.W_lo, self.P)

        if return_padded:
            return out                           # lane-dense (B_pad, E_out) layout, no copy
        return out[:B, :self.post_embed_dim]

    # ---- pure-JAX reference (exact PyTorch forward semantics) -------------------------
    def reference(self, x):
        if self.skip_embedding:
            return jnp.asarray(x, dtype=jnp.float32)
        x = jnp.asarray(x, dtype=jnp.float32)
        cols = []
        c = 0
        for i in range(self.input_dim):
            if self.continuous_idx[i]:
                cols.append(x[:, i:i + 1])
            else:
                ids = x[:, i].astype(jnp.int32)
                cols.append(jnp.take(self.tables_list[c], ids, axis=0))
                c += 1
        return jnp.concatenate(cols, axis=1)


if __name__ == "__main__":
    key = jax.random.PRNGKey(0)
    k_param, k_cont, k_cat = jax.random.split(key, 3)

    batch = 40
    input_dim = 6
    cat_idxs = [1, 3, 5]
    cat_dims = [5, 7, 11]

    # batch_tile=16 -> grid of 3 batch tiles (40 padded to 48) to exercise pipelining.
    gen = EmbeddingGeneratorPallas(input_dim, cat_dims, cat_idxs, key=k_param, batch_tile=16)
    model = Lambda(gen)   # mirrors the PyTorch Lambda(nn.Module) wrapper around a callable

    # (batch, input_dim) input: continuous cols ~ N(0,1); categorical cols hold integer ids.
    # np.array(...) makes a WRITABLE copy (np.asarray of a jax array is read-only).
    x = np.array(jax.random.normal(k_cont, (batch, input_dim), dtype=jnp.float32))
    cat_keys = jax.random.split(k_cat, len(cat_idxs))
    for j, (ci, cd) in enumerate(zip(cat_idxs, cat_dims)):
        ids = jax.random.randint(cat_keys[j], (batch,), 0, cd)
        x[:, ci] = np.asarray(ids).astype(np.float32)
    x = jnp.asarray(x)

    out = jax.block_until_ready(model(x))
    ref = gen.reference(x)

    assert out.shape == (batch, gen.post_embed_dim), (out.shape, gen.post_embed_dim)
    assert out.dtype == jnp.float32
    np.testing.assert_allclose(np.asarray(out), np.asarray(ref), atol=1e-5, rtol=1e-5)

    print("KERNEL_OK")
</pallas_src>

<mosaic_0001>
module attributes {stable_mosaic.version = 11 : i64} {
  func.func @_fused_embed_kernel(%arg0: i32, %arg1: memref<16x8xf32, #tpu.memory_space<vmem>>, %arg2: memref<16x8xf32, #tpu.memory_space<vmem>>, %arg3: memref<8x256xf32, #tpu.memory_space<vmem>>, %arg4: memref<256x128xbf16, #tpu.memory_space<vmem>>, %arg5: memref<256x128xbf16, #tpu.memory_space<vmem>>, %arg6: memref<256x128xbf16, #tpu.memory_space<vmem>>, %arg7: memref<8x128xf32, #tpu.memory_space<vmem>>, %arg8: memref<16x128xf32, #tpu.memory_space<vmem>>) attributes {dimension_semantics = [#tpu.dimension_semantics<parallel>], iteration_bounds = array<i64: 3>, scalar_prefetch = 0 : i64, scratch_operands = 0 : i64, tpu.core_type = #tpu.core_type<tc>, window_params = [{transform_indices = @transform_0, window_bounds = array<i64: 16, 8>}, {transform_indices = @transform_1, window_bounds = array<i64: 16, 8>}, {pipeline_mode = #tpu.pipeline_mode<synchronous>, transform_indices = @transform_2, window_bounds = array<i64: 8, 256>}, {pipeline_mode = #tpu.pipeline_mode<synchronous>, transform_indices = @transform_3, window_bounds = array<i64: 256, 128>}, {pipeline_mode = #tpu.pipeline_mode<synchronous>, transform_indices = @transform_4, window_bounds = array<i64: 256, 128>}, {pipeline_mode = #tpu.pipeline_mode<synchronous>, transform_indices = @transform_5, window_bounds = array<i64: 256, 128>}, {pipeline_mode = #tpu.pipeline_mode<synchronous>, transform_indices = @transform_6, window_bounds = array<i64: 8, 128>}, {transform_indices = @transform_7, window_bounds = array<i64: 16, 128>}]} {
    %c0 = arith.constant 0 : index
    %c0_0 = arith.constant 0 : index
    %0 = vector.load %arg1[%c0, %c0_0] : memref<16x8xf32, #tpu.memory_space<vmem>>, vector<16x8xf32>
    %c0_1 = arith.constant 0 : index
    %c0_2 = arith.constant 0 : index
    %1 = vector.load %arg3[%c0_1, %c0_2] : memref<8x256xf32, #tpu.memory_space<vmem>>, vector<8x256xf32>
    %cst = arith.constant dense<0.000000e+00> : vector<16x256xf32>
    %2 = tpu.matmul %0, %1, %cst {dimension_numbers = #tpu.dot_dimension_numbers<[1], [0], [0], [1], [0, 0, 1, 1], [], []>, precision = #tpu.contract_precision<fp32>} : vector<16x8xf32>, vector<8x256xf32>, vector<16x256xf32> -> vector<16x256xf32>
    %3 = tpu.iota {dimensions = array<i32: 1>} : vector<16x256xi32>
    %4 = arith.fptosi %2 : vector<16x256xf32> to vector<16x256xi32>
    %5 = arith.cmpi eq, %4, %3 : vector<16x256xi32>
    %cst_3 = arith.constant 1.000000e+00 : f32
    %cst_4 = arith.constant 0.000000e+00 : f32
    %6 = vector.broadcast %cst_3 : f32 to vector<16x256xf32>
    %7 = vector.broadcast %cst_4 : f32 to vector<16x256xf32>
    %8 = arith.select %5, %6, %7 : vector<16x256xi1>, vector<16x256xf32>
    %9 = arith.truncf %8 : vector<16x256xf32> to vector<16x256xbf16>
    %c0_5 = arith.constant 0 : index
    %c0_6 = arith.constant 0 : index
    %10 = vector.load %arg4[%c0_5, %c0_6] : memref<256x128xbf16, #tpu.memory_space<vmem>>, vector<256x128xbf16>
    %cst_7 = arith.constant dense<0.000000e+00> : vector<16x128xf32>
    %11 = tpu.matmul %9, %10, %cst_7 {dimension_numbers = #tpu.dot_dimension_numbers<[1], [0], [0], [1], [0, 0, 1, 1], [], []>} : vector<16x256xbf16>, vector<256x128xbf16>, vector<16x128xf32> -> vector<16x128xf32>
    %c0_8 = arith.constant 0 : index
    %c0_9 = arith.constant 0 : index
    %12 = vector.load %arg5[%c0_8, %c0_9] : memref<256x128xbf16, #tpu.memory_space<vmem>>, vector<256x128xbf16>
    %cst_10 = arith.constant dense<0.000000e+00> : vector<16x128xf32>
    %13 = tpu.matmul %9, %12, %cst_10 {dimension_numbers = #tpu.dot_dimension_numbers<[1], [0], [0], [1], [0, 0, 1, 1], [], []>} : vector<16x256xbf16>, vector<256x128xbf16>, vector<16x128xf32> -> vector<16x128xf32>
    %14 = arith.addf %11, %13 : vector<16x128xf32>
    %c0_11 = arith.constant 0 : index
    %c0_12 = arith.constant 0 : index
    %15 = vector.load %arg6[%c0_11, %c0_12] : memref<256x128xbf16, #tpu.memory_space<vmem>>, vector<256x128xbf16>
    %cst_13 = arith.constant dense<0.000000e+00> : vector<16x128xf32>
    %16 = tpu.matmul %9, %15, %cst_13 {dimension_numbers = #tpu.dot_dimension_numbers<[1], [0], [0], [1], [0, 0, 1, 1], [], []>} : vector<16x256xbf16>, vector<256x128xbf16>, vector<16x128xf32> -> vector<16x128xf32>
    %17 = arith.addf %14, %16 : vector<16x128xf32>
    %c0_14 = arith.constant 0 : index
    %c0_15 = arith.constant 0 : index
    %18 = vector.load %arg2[%c0_14, %c0_15] : memref<16x8xf32, #tpu.memory_space<vmem>>, vector<16x8xf32>
    %c0_16 = arith.constant 0 : index
    %c0_17 = arith.constant 0 : index
    %19 = vector.load %arg7[%c0_16, %c0_17] : memref<8x128xf32, #tpu.memory_space<vmem>>, vector<8x128xf32>
    %cst_18 = arith.constant dense<0.000000e+00> : vector<16x128xf32>
    %20 = tpu.matmul %18, %19, %cst_18 {dimension_numbers = #tpu.dot_dimension_numbers<[1], [0], [0], [1], [0, 0, 1, 1], [], []>, precision = #tpu.contract_precision<fp32>} : vector<16x8xf32>, vector<8x128xf32>, vector<16x128xf32> -> vector<16x128xf32>
    %21 = arith.addf %17, %20 : vector<16x128xf32>
    %c0_19 = arith.constant 0 : index
    %c0_20 = arith.constant 0 : index
    %22 = vector.load %arg8[%c0_19, %c0_20] : memref<16x128xf32, #tpu.memory_space<vmem>>, vector<16x128xf32>
    tpu.vector_store %arg8[%c0_19, %c0_20], %21 {strides = array<i32>} : memref<16x128xf32, #tpu.memory_space<vmem>>, vector<16x128xf32>,
    return
  }
  func.func @transform_0(%arg0: i32) -> (i32, i32) {
    %c0_i32 = arith.constant 0 : i32
    %c0_i32_0 = arith.constant 0 : i32
    return %arg0, %c0_i32 : i32, i32
  }
  func.func @transform_1(%arg0: i32) -> (i32, i32) {
    %c0_i32 = arith.constant 0 : i32
    %c0_i32_0 = arith.constant 0 : i32
    return %arg0, %c0_i32 : i32, i32
  }
  func.func @transform_2(%arg0: i32) -> (i32, i32) {
    %c0_i32 = arith.constant 0 : i32
    %c0_i32_0 = arith.constant 0 : i32
    %c0_i32_1 = arith.constant 0 : i32
    return %c0_i32, %c0_i32_0 : i32, i32
  }
  func.func @transform_3(%arg0: i32) -> (i32, i32) {
    %c0_i32 = arith.constant 0 : i32
    %c0_i32_0 = arith.constant 0 : i32
    %c0_i32_1 = arith.constant 0 : i32
    return %c0_i32, %c0_i32_0 : i32, i32
  }
  func.func @transform_4(%arg0: i32) -> (i32, i32) {
    %c0_i32 = arith.constant 0 : i32
    %c0_i32_0 = arith.constant 0 : i32
    %c0_i32_1 = arith.constant 0 : i32
    return %c0_i32, %c0_i32_0 : i32, i32
  }
  func.func @transform_5(%arg0: i32) -> (i32, i32) {
    %c0_i32 = arith.constant 0 : i32
    %c0_i32_0 = arith.constant 0 : i32
    %c0_i32_1 = arith.constant 0 : i32
    return %c0_i32, %c0_i32_0 : i32, i32
  }
  func.func @transform_6(%arg0: i32) -> (i32, i32) {
    %c0_i32 = arith.constant 0 : i32
    %c0_i32_0 = arith.constant 0 : i32
    %c0_i32_1 = arith.constant 0 : i32
    return %c0_i32, %c0_i32_0 : i32, i32
  }
  func.func @transform_7(%arg0: i32) -> (i32, i32) {
    %c0_i32 = arith.constant 0 : i32
    %c0_i32_0 = arith.constant 0 : i32
    return %arg0, %c0_i32 : i32, i32
  }
}

</mosaic_0001>

<llo_original>
// kernel: tpu_custom_call.1
$region0: #{tpu_custom_call.1}
  #allocation0 [shape = 'u32[]', space=smem, size = 0x4, offset = 0x4, fixed_abs, tag = 'smem constant byte address 0x4 - core index']
  #allocation1 [shape = 'u32[144,128]{1,0:T(1,128)}', space=vmem, size = 0x12000, scoped, tag = 'internal scratch']
  %s0 = inlined_call_operand.vmem [shape: f32[48,8], index: 0, kind: input, shape index: {}]
  %s1 = inlined_call_operand.vmem [shape: f32[48,8], index: 1, kind: input, shape index: {}]
  %s2 = inlined_call_operand.hbm [shape: f32[8,256], index: 2, kind: input, shape index: {}]
  %s3 = inlined_call_operand.hbm [shape: bf16[256,128], index: 3, kind: input, shape index: {}]
  %s4 = inlined_call_operand.hbm [shape: bf16[256,128], index: 4, kind: input, shape index: {}]
  %s5 = inlined_call_operand.vmem [shape: bf16[256,128], index: 5, kind: input, shape index: {}]
  %s6 = inlined_call_operand.hbm [shape: f32[8,128], index: 6, kind: input, shape index: {}]
  %s7 = inlined_call_operand.hbm [shape: f32[48,128], index: 7, kind: output, shape index: {}]
  %s8 = sld [smem:[#allocation0]]
  $region77: #{tpu_custom_call.1} parent=0
    _
  %s10 = ssub.s32 1, %s8
  %s11 = scalar_select 0, %s10, %s8
  $region1: #{tpu_custom_call.1} parent=0
    #allocation2 [shape = 'u8[8192]{0}', space=vmem, size = 0x2000, scoped, tag = 'input window, operand 2, single buffered']
    #allocation3 [shape = 's32[2]{0}', space=sflag, size = 0x8, scoped, tag = 'scoped memory for tpu_custom_call.1']
    #allocation4 [shape = 's32[2]{0}', space=sflag, size = 0x8, scoped, tag = 'scoped memory for tpu_custom_call.1']
    #allocation5 [shape = 'u8[65536]{0}', space=vmem, size = 0x10000, scoped, tag = 'input window, operand 3, single buffered']
    #allocation6 [shape = 's32[1]{0}', space=sflag, size = 0x4, scoped, tag = 'scoped memory for tpu_custom_call.1']
    #allocation7 [shape = 'u8[65536]{0}', space=vmem, size = 0x10000, scoped, tag = 'input window, operand 4, single buffered']
    #allocation8 [shape = 'u8[4096]{0}', space=vmem, size = 0x1000, scoped, tag = 'input window, operand 6, single buffered']
    #allocation9 [shape = 's32[1]{0}', space=sflag, size = 0x4, scoped, tag = 'scoped memory for tpu_custom_call.1']
    #allocation10 [shape = 'u8[16384]{0}', space=vmem, size = 0x4000, scoped, tag = 'output window, operand 0']
    %12 = vsyncpa [#allocation3], 0
    %13 = vsyncpa [#allocation6], 0
    %14 = vsyncpa [#allocation9], 0
    %15 = vsyncpa [#allocation4], 0
    %s16 = scalar_lea.sflag [#allocation4], 1
    %17 = vsyncpa %s16, 0
    loop: start=0, step=1, limit=5
    $region2: #{tpu_custom_call.1} parent=1 // loop_pre_header
      _
    $region3: #{tpu_custom_call.1} parent=1 // loop_header
      %s19 = sphi 0, %s23
      %p20 = scmp.ge.s32.totalorder %s19, 5
      %s29 = sphi 0, %s31
      %s32 = sphi 0, %s29
      %s33 = sphi 0, %s32
      %s49 = sphi 0, %s33
      %s55 = sphi 0, %s57
      %s58 = sphi 0, %s55
      %s59 = sphi 0, %s58
      %s75 = sphi 0, %s59
      %s79 = sphi 0, %s79
      %s81 = sphi 0, %s79
      %s82 = sphi 0, %s81
      %s96 = sphi 0, %s82
      %s100 = sphi 0, %s100
      %s102 = sphi 0, %s100
      %s103 = sphi 0, %s102
      %s117 = sphi 0, %s103
      %s121 = sphi 0, %s121
      %s123 = sphi 0, %s121
      %s124 = sphi 0, %s123
      %s138 = sphi 0, %s124
      %s142 = sphi 0, %s142
      %s144 = sphi 0, %s142
      %s145 = sphi 0, %s144
      %s159 = sphi 0, %s145
      %s163 = sphi 0, %s163
      %s165 = sphi 0, %s163
      %s166 = sphi 0, %s165
      %s180 = sphi 0, %s166
      %s186 = sphi 0, %s188
      %s189 = sphi 0, %s186
      %s190 = sphi 0, %s189
      %s206 = sphi 0, %s190
    $region4: #{tpu_custom_call.1} parent=1 // loop_header_branch
      %22 = sbr.rel (%p20) target = $region8
    $region5: #{tpu_custom_call.1} parent=1 // loop_body
      %s24 = ssub.s32 %s19, 1
      %s25 = ssub.s32 %s19, 2
      %s26 = sadd.s32 %s19, 1
      %s27 = ssub.s32 %s19, %s26
      %p28 = scmp.eq.s32.totalorder %s27, 0
      %s30 = sadd.s32 %s29, 1
      %s31 = scalar_select %p28, %s29, %s30
      %p34 = pneg %p28
      %p35 = scmp.eq.s32.totalorder %s19, 2
      %p36 = por %p34, %p35
      %p37 = scmp.ne.s32.totalorder %s29, %s32
      %p38 = scmp.eq.s32.totalorder %s19, 0
      %p39 = por %p37, %p38
      %p40 = scmp.ne.s32.totalorder %s29, %s32
      %p41 = scmp.eq.s32.totalorder %s24, 2
      %p42 = por %p40, %p41
      %p43 = scmp.ne.s32.totalorder %s32, %s33
      %p44 = scmp.eq.s32.totalorder %s24, 0
      %p45 = por %p43, %p44
      %p46 = scmp.ne.s32.totalorder %s32, %s33
      %p47 = scmp.eq.s32.totalorder %s25, 2
      %p48 = por %p46, %p47
      %p50 = scmp.ne.s32.totalorder %s33, %s49
      %p51 = scmp.eq.s32.totalorder %s25, 0
      %p52 = por %p50, %p51
      %s53 = ssub.s32 %s19, %s26
      %p54 = scmp.eq.s32.totalorder %s53, 0
      %s56 = sadd.s32 %s55, 1
      %s57 = scalar_select %p54, %s55, %s56
      %p60 = pneg %p54
      %p61 = scmp.eq.s32.totalorder %s19, 2
      %p62 = por %p60, %p61
      %p63 = scmp.ne.s32.totalorder %s55, %s58
      %p64 = scmp.eq.s32.totalorder %s19, 0
      %p65 = por %p63, %p64
      %p66 = scmp.ne.s32.totalorder %s55, %s58
      %p67 = scmp.eq.s32.totalorder %s24, 2
      %p68 = por %p66, %p67
      %p69 = scmp.ne.s32.totalorder %s58, %s59
      %p70 = scmp.eq.s32.totalorder %s24, 0
      %p71 = por %p69, %p70
      %p72 = scmp.ne.s32.totalorder %s58, %s59
      %p73 = scmp.eq.s32.totalorder %s25, 2
      %p74 = por %p72, %p73
      %p76 = scmp.ne.s32.totalorder %s59, %s75
      %p77 = scmp.eq.s32.totalorder %s25, 0
      %p78 = por %p76, %p77
      %s80 = sadd.s32 %s79, 1
      %p83 = scmp.eq.s32.totalorder %s19, 2
      %p84 = scmp.ne.s32.totalorder %s79, %s81
      %p85 = scmp.eq.s32.totalorder %s19, 0
      %p86 = por %p84, %p85
      %p87 = scmp.ne.s32.totalorder %s79, %s81
      %p88 = scmp.eq.s32.totalorder %s24, 2
      %p89 = por %p87, %p88
      %p90 = scmp.ne.s32.totalorder %s81, %s82
      %p91 = scmp.eq.s32.totalorder %s24, 0
      %p92 = por %p90, %p91
      %p93 = scmp.ne.s32.totalorder %s81, %s82
      %p94 = scmp.eq.s32.totalorder %s25, 2
      %p95 = por %p93, %p94
      %p97 = scmp.ne.s32.totalorder %s82, %s96
      %p98 = scmp.eq.s32.totalorder %s25, 0
      %p99 = por %p97, %p98
      %s101 = sadd.s32 %s100, 1
      %p104 = scmp.eq.s32.totalorder %s19, 2
      %p105 = scmp.ne.s32.totalorder %s100, %s102
      %p106 = scmp.eq.s32.totalorder %s19, 0
      %p107 = por %p105, %p106
      %p108 = scmp.ne.s32.totalorder %s100, %s102
      %p109 = scmp.eq.s32.totalorder %s24, 2
      %p110 = por %p108, %p109
      %p111 = scmp.ne.s32.totalorder %s102, %s103
      %p112 = scmp.eq.s32.totalorder %s24, 0
      %p113 = por %p111, %p112
      %p114 = scmp.ne.s32.totalorder %s102, %s103
      %p115 = scmp.eq.s32.totalorder %s25, 2
      %p116 = por %p114, %p115
      %p118 = scmp.ne.s32.totalorder %s103, %s117
      %p119 = scmp.eq.s32.totalorder %s25, 0
      %p120 = por %p118, %p119
      %s122 = sadd.s32 %s121, 1
      %p125 = scmp.eq.s32.totalorder %s19, 2
      %p126 = scmp.ne.s32.totalorder %s121, %s123
      %p127 = scmp.eq.s32.totalorder %s19, 0
      %p128 = por %p126, %p127
      %p129 = scmp.ne.s32.totalorder %s121, %s123
      %p130 = scmp.eq.s32.totalorder %s24, 2
      %p131 = por %p129, %p130
      %p132 = scmp.ne.s32.totalorder %s123, %s124
      %p133 = scmp.eq.s32.totalorder %s24, 0
      %p134 = por %p132, %p133
      %p135 = scmp.ne.s32.totalorder %s123, %s124
      %p136 = scmp.eq.s32.totalorder %s25, 2
      %p137 = por %p135, %p136
      %p139 = scmp.ne.s32.totalorder %s124, %s138
      %p140 = scmp.eq.s32.totalorder %s25, 0
      %p141 = por %p139, %p140
      %s143 = sadd.s32 %s142, 1
      %p146 = scmp.eq.s32.totalorder %s19, 2
      %p147 = scmp.ne.s32.totalorder %s142, %s144
      %p148 = scmp.eq.s32.totalorder %s19, 0
      %p149 = por %p147, %p148
      %p150 = scmp.ne.s32.totalorder %s142, %s144
      %p151 = scmp.eq.s32.totalorder %s24, 2
      %p152 = por %p150, %p151
      %p153 = scmp.ne.s32.totalorder %s144, %s145
      %p154 = scmp.eq.s32.totalorder %s24, 0
      %p155 = por %p153, %p154
      %p156 = scmp.ne.s32.totalorder %s144, %s145
      %p157 = scmp.eq.s32.totalorder %s25, 2
      %p158 = por %p156, %p157
      %p160 = scmp.ne.s32.totalorder %s145, %s159
      %p161 = scmp.eq.s32.totalorder %s25, 0
      %p162 = por %p160, %p161
      %s164 = sadd.s32 %s163, 1
      %p167 = scmp.eq.s32.totalorder %s19, 2
      %p168 = scmp.ne.s32.totalorder %s163, %s165
      %p169 = scmp.eq.s32.totalorder %s19, 0
      %p170 = por %p168, %p169
      %p171 = scmp.ne.s32.totalorder %s163, %s165
      %p172 = scmp.eq.s32.totalorder %s24, 2
      %p173 = por %p171, %p172
      %p174 = scmp.ne.s32.totalorder %s165, %s166
      %p175 = scmp.eq.s32.totalorder %s24, 0
      %p176 = por %p174, %p175
      %p177 = scmp.ne.s32.totalorder %s165, %s166
      %p178 = scmp.eq.s32.totalorder %s25, 2
      %p179 = por %p177, %p178
      %p181 = scmp.ne.s32.totalorder %s166, %s180
      %p182 = scmp.eq.s32.totalorder %s25, 0
      %p183 = por %p181, %p182
      %s184 = ssub.s32 %s19, %s26
      %p185 = scmp.eq.s32.totalorder %s184, 0
      %s187 = sadd.s32 %s186, 1
      %s188 = scalar_select %p185, %s186, %s187
      %p191 = pneg %p185
      %p192 = scmp.eq.s32.totalorder %s19, 2
      %p193 = por %p191, %p192
      %p194 = scmp.ne.s32.totalorder %s186, %s189
      %p195 = scmp.eq.s32.totalorder %s19, 0
      %p196 = por %p194, %p195
      %p197 = scmp.ne.s32.totalorder %s186, %s189
      %p198 = scmp.eq.s32.totalorder %s24, 2
      %p199 = por %p197, %p198
      %p200 = scmp.ne.s32.totalorder %s189, %s190
      %p201 = scmp.eq.s32.totalorder %s24, 0
      %p202 = por %p200, %p201
      %p203 = scmp.ne.s32.totalorder %s189, %s190
      %p204 = scmp.eq.s32.totalorder %s25, 2
      %p205 = por %p203, %p204
      %p207 = scmp.ne.s32.totalorder %s190, %s206
      %p208 = scmp.eq.s32.totalorder %s25, 0
      %p209 = por %p207, %p208
      %p210 = scmp.le.s32.totalorder 1, %s19
      %p211 = scmp.lt.s32.totalorder %s19, 4
      %p212 = pnand %p210, %p211
      %p213 = pneg %p212
      // Predicated region
      $region9: #{tpu_custom_call.1} parent=5 // pred_check
        _
      $region10: #{tpu_custom_call.1} parent=5 // pred_check_branch
        %215 = sbr.rel (%p212) target = $region12
      $region11: #{tpu_custom_call.1} parent=5 // pred_region
        %s216 = ssub.s32 %s19, 1
        // Predicated region
        $region13: #{tpu_custom_call.1} parent=11 // pred_check
          %p217 = pneg %p92
        $region14: #{tpu_custom_call.1} parent=11 // pred_check_branch
          %219 = sbr.rel (%p217) target = $region16
        $region15: #{tpu_custom_call.1} parent=11 // pred_region
          %s221 = ssub.s32 256, 256
          %222 = vsyncadd [#allocation3], %s221
          %s224 = sshll.u32 [#allocation2], 4
          %s225 = int_to_ptr.vmem [resolvable:$true] %s224
          %227 = dma.hbm_to_vmem [thread:$0]  %s2, 256, %s225, [#allocation3]
        $region16: #{tpu_custom_call.1} parent=11 // pred_fallthru
          _
        // Predicated region
        $region17: #{tpu_custom_call.1} parent=11 // pred_check
          %p228 = pneg %p113
        $region18: #{tpu_custom_call.1} parent=11 // pred_check_branch
          %230 = sbr.rel (%p228) target = $region20
        $region19: #{tpu_custom_call.1} parent=11 // pred_region
          %s232 = ssub.s32 2048, 2048
          %233 = vsyncadd [#allocation6], %s232
          %s234 = sshll.u32 [#allocation5], 4
          %s235 = int_to_ptr.vmem [resolvable:$true] %s234
          %240 = dma.hbm_to_vmem [thread:$0]  %s3, 2048, %s235, [#allocation6], 64, 64, 4
        $region20: #{tpu_custom_call.1} parent=11 // pred_fallthru
          _
        // Predicated region
        $region21: #{tpu_custom_call.1} parent=11 // pred_check
          %p241 = pneg %p134
        $region22: #{tpu_custom_call.1} parent=11 // pred_check_branch
          %243 = sbr.rel (%p241) target = $region24
        $region23: #{tpu_custom_call.1} parent=11 // pred_region
          %s245 = ssub.s32 2048, 2048
          %246 = vsyncadd [#allocation6], %s245
          %s247 = sshll.u32 [#allocation7], 4
          %s248 = int_to_ptr.vmem [resolvable:$true] %s247
          %253 = dma.hbm_to_vmem [thread:$0]  %s4, 2048, %s248, [#allocation6], 64, 64, 4
        $region24: #{tpu_custom_call.1} parent=11 // pred_fallthru
          _
        // Predicated region
        $region25: #{tpu_custom_call.1} parent=11 // pred_check
          %p254 = pneg %p155
        $region26: #{tpu_custom_call.1} parent=11 // pred_check_branch
          %256 = sbr.rel (%p254) target = $region28
        $region27: #{tpu_custom_call.1} parent=11 // pred_region
          _
        $region28: #{tpu_custom_call.1} parent=11 // pred_fallthru
          _
        // Predicated region
        $region29: #{tpu_custom_call.1} parent=11 // pred_check
          %p257 = pneg %p176
        $region30: #{tpu_custom_call.1} parent=11 // pred_check_branch
          %259 = sbr.rel (%p257) target = $region32
        $region31: #{tpu_custom_call.1} parent=11 // pred_region
          %s261 = ssub.s32 128, 128
          %262 = vsyncadd [#allocation9], %s261
          %s264 = sshll.u32 [#allocation8], 4
          %s265 = int_to_ptr.vmem [resolvable:$true] %s264
          %267 = dma.hbm_to_vmem [thread:$0]  %s6, 128, %s265, [#allocation9]
        $region32: #{tpu_custom_call.1} parent=11 // pred_fallthru
          _
      $region12: #{tpu_custom_call.1} parent=5 // pred_fallthru
        _
      %p268 = scmp.lt.s32.totalorder %s19, 3
      // Predicated region
      $region33: #{tpu_custom_call.1} parent=5 // pred_check
        %p269 = pneg %p268
      $region34: #{tpu_custom_call.1} parent=5 // pred_check_branch
        %271 = sbr.rel (%p269) target = $region36
      $region35: #{tpu_custom_call.1} parent=5 // pred_region
        // Predicated region
        $region37: #{tpu_custom_call.1} parent=35 // pred_check
          %p272 = pneg %p39
        $region38: #{tpu_custom_call.1} parent=35 // pred_check_branch
          %274 = sbr.rel (%p272) target = $region40
        $region39: #{tpu_custom_call.1} parent=35 // pred_region
          %s275 = smul.u32 2, %s19
          %p276 = scmp.lt.s32.totalorder %s275, 5
          %s277 = scalar_select %p276, %s275, 5
          %s278 = smul.addr %s277, 8
          %s279 = scalar_lea.vmem %s0, %s278
          %s280 = smul.u32 2, %s19
        $region40: #{tpu_custom_call.1} parent=35 // pred_fallthru
          _
        // Predicated region
        $region41: #{tpu_custom_call.1} parent=35 // pred_check
          %p281 = pneg %p65
        $region42: #{tpu_custom_call.1} parent=35 // pred_check_branch
          %283 = sbr.rel (%p281) target = $region44
        $region43: #{tpu_custom_call.1} parent=35 // pred_region
          %s284 = smul.u32 2, %s19
          %p285 = scmp.lt.s32.totalorder %s284, 5
          %s286 = scalar_select %p285, %s284, 5
          %s287 = smul.addr %s286, 8
          %s288 = scalar_lea.vmem %s1, %s287
          %s289 = smul.u32 2, %s19
        $region44: #{tpu_custom_call.1} parent=35 // pred_fallthru
          _
      $region36: #{tpu_custom_call.1} parent=5 // pred_fallthru
        _
      %p290 = scmp.le.s32.totalorder 1, %s19
      %p291 = scmp.lt.s32.totalorder %s19, 4
      %p292 = pnand %p290, %p291
      %p293 = pneg %p292
      // Predicated region
      $region45: #{tpu_custom_call.1} parent=5 // pred_check
        _
      $region46: #{tpu_custom_call.1} parent=5 // pred_check_branch
        %295 = sbr.rel (%p292) target = $region48
      $region47: #{tpu_custom_call.1} parent=5 // pred_region
        %s296 = ssub.s32 %s19, 1
        // Predicated region
        $region49: #{tpu_custom_call.1} parent=47 // pred_check
          %p297 = pneg %p92
        $region50: #{tpu_custom_call.1} parent=47 // pred_check_branch
          %299 = sbr.rel (%p297) target = $region52
        $region51: #{tpu_custom_call.1} parent=47 // pred_region
          %300 = dma.done [#allocation3], 256
        $region52: #{tpu_custom_call.1} parent=47 // pred_fallthru
          _
        // Predicated region
        $region53: #{tpu_custom_call.1} parent=47 // pred_check
          %p301 = pneg %p113
        $region54: #{tpu_custom_call.1} parent=47 // pred_check_branch
          %303 = sbr.rel (%p301) target = $region56
        $region55: #{tpu_custom_call.1} parent=47 // pred_region
          %304 = dma.done [#allocation6], 2048
        $region56: #{tpu_custom_call.1} parent=47 // pred_fallthru
          _
        // Predicated region
        $region57: #{tpu_custom_call.1} parent=47 // pred_check
          %p305 = pneg %p134
        $region58: #{tpu_custom_call.1} parent=47 // pred_check_branch
          %307 = sbr.rel (%p305) target = $region60
        $region59: #{tpu_custom_call.1} parent=47 // pred_region
          %308 = dma.done [#allocation6], 2048
        $region60: #{tpu_custom_call.1} parent=47 // pred_fallthru
          _
        // Predicated region
        $region61: #{tpu_custom_call.1} parent=47 // pred_check
          %p309 = pneg %p176
        $region62: #{tpu_custom_call.1} parent=47 // pred_check_branch
          %311 = sbr.rel (%p309) target = $region64
        $region63: #{tpu_custom_call.1} parent=47 // pred_region
          %312 = dma.done [#allocation9], 128
        $region64: #{tpu_custom_call.1} parent=47 // pred_fallthru
          _
        %s313 = smul.u32 2, %s24
        %p314 = scmp.lt.s32.totalorder %s313, 5
        %s315 = scalar_select %p314, %s313, 5
        %s316 = smul.addr %s315, 8
        %s317 = scalar_lea.vmem %s0, %s316
        %p318 = pneg %p45
        %p319 = pneg %p42
        %s320 = smul.u32 2, %s24
        %p321 = scmp.lt.s32.totalorder %s320, 5
        %s322 = scalar_select %p321, %s320, 5
        %s323 = smul.addr %s322, 8
        %s324 = scalar_lea.vmem %s1, %s323
        %p325 = pneg %p71
        %p326 = pneg %p68
        %p327 = pneg %p92
        %p328 = pneg %p89
        %p329 = pneg %p113
        %p330 = pneg %p110
        %p331 = pneg %p134
        %p332 = pneg %p131
        %p333 = pneg %p155
        %p334 = pneg %p152
        %p335 = pneg %p176
        %p336 = pneg %p173
        %p337 = pneg %p202
        %p338 = pneg %p199
        %s339 = sand.u32 %s189, 1
        %s340 = scalar_lea.sflag [#allocation4], %s339
        %s341 = sand.u32 %s189, 1
        %s342 = smul.addr %s341, 16
        %s343 = scalar_lea.vmem [#allocation10], %s342
        %s344 = smul.u32 2, %s24
        %p345 = scmp.lt.s32.totalorder %s344, 5
        %s346 = scalar_select %p345, %s344, 5
        %s347 = smul.addr %s346, 8
        %s348 = scalar_lea.vmem %s0, %s347
        %s349 = smul.u32 2, %s24
        %s350 = smul.u32 2, %s24
        %p351 = scmp.lt.s32.totalorder %s350, 5
        %s352 = scalar_select %p351, %s350, 5
        %s353 = smul.addr %s352, 8
        %s354 = scalar_lea.vmem %s1, %s353
        %s355 = smul.u32 2, %s24
        %s356 = smul.u32 2, %s24
        %v358 = vld [vmem:[%s348] sm:$0xff]
        %v359 = vld [vmem:[%s348 + $0x8] sm:$0xff]
        %v360 = vld [vmem:[#allocation2] sm:$0xff]
        %v361 = vld [vmem:[#allocation2 + $0x8] sm:$0xff]
        %vm362 = vcmask 64512
        %v364 = vsel %vm362, %v358, 0
        %v367 = vsel %vm362, %v359, 0
        %v369 = vand.u32 %v361, 4294901760
        %370 = vmatprep.subr.mxu0 %v369
        %v371 = vand.u32 %v360, 4294901760
        %372 = vmatpush1.msra.mxu0 %v371
        %373 = vmatprep.subr.mxu0 0.0
        %374 = vmatpush1.msra.mxu0 0.0
        %375 = vmatprep.subr.mxu0 0.0
        %376 = vmatpush1.msra.mxu0 0.0
        %377 = vmatprep.subr.mxu0 0.0
        %378 = vmatpush1.msra.mxu0 0.0
        %379 = vmatprep.subr.mxu0 0.0
        %380 = vmatpush1.msra.mxu0 0.0
        %381 = vmatprep.subr.mxu0 0.0
        %382 = vmatpush1.msra.mxu0 0.0
        %383 = vmatprep.subr.mxu0 0.0
        %384 = vmatpush1.msra.mxu0 0.0
        %385 = vmatprep.subr.mxu0 0.0
        %386 = vmatpush1.msra.mxu0 0.0
        %387 = vmatprep.subr.mxu0 0.0
        %388 = vmatpush1.msra.mxu0 0.0
        %389 = vmatprep.subr.mxu0 0.0
        %390 = vmatpush1.msra.mxu0 0.0
        %391 = vmatprep.subr.mxu0 0.0
        %392 = vmatpush1.msra.mxu0 0.0
        %393 = vmatprep.subr.mxu0 0.0
        %394 = vmatpush1.msra.mxu0 0.0
        %395 = vmatprep.subr.mxu0 0.0
        %396 = vmatpush1.msra.mxu0 0.0
        %397 = vmatprep.subr.mxu0 0.0
        %398 = vmatpush1.msra.mxu0 0.0
        %399 = vmatprep.subr.mxu0 0.0
        %400 = vmatpush1.msra.mxu0 0.0
        %401 = vmatprep.subr.mxu0 0.0
        %402 = vmatpush1.msra.mxu0 0.0
        %403 = vmatprep.subr.mxu0 0.0
        %404 = vmatpush1.msra.mxu0 0.0
        %405 = vmatprep.subr.mxu0 0.0
        %406 = vmatpush1.msra.mxu0 0.0
        %407 = vmatprep.subr.mxu0 0.0
        %408 = vmatpush1.msra.mxu0 0.0
        %409 = vmatprep.subr.mxu0 0.0
        %410 = vmatpush1.msra.mxu0 0.0
        %411 = vmatprep.subr.mxu0 0.0
        %412 = vmatpush1.msra.mxu0 0.0
        %413 = vmatprep.subr.mxu0 0.0
        %414 = vmatpush1.msra.mxu0 0.0
        %415 = vmatprep.subr.mxu0 0.0
        %416 = vmatpush1.msra.mxu0 0.0
        %417 = vmatprep.subr.mxu0 0.0
        %418 = vmatpush1.msra.mxu0 0.0
        %419 = vmatprep.subr.mxu0 0.0
        %420 = vmatpush1.msra.mxu0 0.0
        %421 = vmatprep.subr.mxu0 0.0
        %422 = vmatpush1.msra.mxu0 0.0
        %423 = vmatprep.subr.mxu0 0.0
        %424 = vmatpush1.msra.mxu0 0.0
        %425 = vmatprep.subr.mxu0 0.0
        %426 = vmatpush1.msra.mxu0 0.0
        %427 = vmatprep.subr.mxu0 0.0
        %428 = vmatpush1.msra.mxu0 0.0
        %429 = vmatprep.subr.mxu0 0.0
        %430 = vmatpush1.msra.mxu0 0.0
        %431 = vmatprep.subr.mxu0 0.0
        %432 = vmatpush1.msra.mxu0 0.0
        %433 = vmatprep.subr.mxu0 0.0
        %434 = vmatpush1.msra.mxu0 0.0
        %435 = vmatprep.mubr.f32.mxu0 0.0
        %v436 = vand.u32 %v364, 4294901760
        %v437 = vsub.f32 %v364, %v436
        %v438 = vand.u32 %v437, 4294901760
        %v439 = vsub.f32 %v437, %v438
        %v440 = vand.u32 %v439, 4294901760
        %441 = vmatmul.mubr.f32.gmra.mrb[0].mxu0 %v440
        %v442 = vpop.f32.mrb[0].mxu0
        %v443 = vadd.f32 0.0, %v442
        %v444 = vpop.f32.mrb[0].mxu0
        %v445 = vadd.f32 0.0, %v444
        %446 = vmatprep.mubr.f32.mxu0 0.0
        %v447 = vand.u32 %v367, 4294901760
        %v448 = vsub.f32 %v367, %v447
        %v449 = vand.u32 %v448, 4294901760
        %v450 = vsub.f32 %v448, %v449
        %v451 = vand.u32 %v450, 4294901760
        %452 = vmatmul.mubr.f32.gmra.mrb[0].mxu0 %v451
        %v453 = vpop.f32.mrb[0].mxu0
        %v454 = vadd.f32 0.0, %v453
        %v455 = vpop.f32.mrb[0].mxu0
        %v456 = vadd.f32 0.0, %v455
        %457 = vdwg.mxu0
        %v458 = vand.u32 %v361, 4294901760
        %v459 = vsub.f32 %v361, %v458
        %v460 = vand.u32 %v459, 4294901760
        %v461 = vsub.f32 %v459, %v460
        %v462 = vand.u32 %v461, 4294901760
        %463 = vmatprep.subr.mxu0 %v462
        %v464 = vand.u32 %v360, 4294901760
        %v465 = vsub.f32 %v360, %v464
        %v466 = vand.u32 %v465, 4294901760
        %v467 = vsub.f32 %v465, %v466
        %v468 = vand.u32 %v467, 4294901760
        %469 = vmatpush1.msra.mxu0 %v468
        %470 = vmatprep.subr.mxu0 0.0
        %471 = vmatpush1.msra.mxu0 0.0
        %472 = vmatprep.subr.mxu0 0.0
        %473 = vmatpush1.msra.mxu0 0.0
        %474 = vmatprep.subr.mxu0 0.0
        %475 = vmatpush1.msra.mxu0 0.0
        %476 = vmatprep.subr.mxu0 0.0
        %477 = vmatpush1.msra.mxu0 0.0
        %478 = vmatprep.subr.mxu0 0.0
        %479 = vmatpush1.msra.mxu0 0.0
        %480 = vmatprep.subr.mxu0 0.0
        %481 = vmatpush1.msra.mxu0 0.0
        %482 = vmatprep.subr.mxu0 0.0
        %483 = vmatpush1.msra.mxu0 0.0
        %484 = vmatprep.subr.mxu0 0.0
        %485 = vmatpush1.msra.mxu0 0.0
        %486 = vmatprep.subr.mxu0 0.0
        %487 = vmatpush1.msra.mxu0 0.0
        %488 = vmatprep.subr.mxu0 0.0
        %489 = vmatpush1.msra.mxu0 0.0
        %490 = vmatprep.subr.mxu0 0.0
        %491 = vmatpush1.msra.mxu0 0.0
        %492 = vmatprep.subr.mxu0 0.0
        %493 = vmatpush1.msra.mxu0 0.0
        %494 = vmatprep.subr.mxu0 0.0
        %495 = vmatpush1.msra.mxu0 0.0
        %496 = vmatprep.subr.mxu0 0.0
        %497 = vmatpush1.msra.mxu0 0.0
        %498 = vmatprep.subr.mxu0 0.0
        %499 = vmatpush1.msra.mxu0 0.0
        %500 = vmatprep.subr.mxu0 0.0
        %501 = vmatpush1.msra.mxu0 0.0
        %502 = vmatprep.subr.mxu0 0.0
        %503 = vmatpush1.msra.mxu0 0.0
        %504 = vmatprep.subr.mxu0 0.0
        %505 = vmatpush1.msra.mxu0 0.0
        %506 = vmatprep.subr.mxu0 0.0
        %507 = vmatpush1.msra.mxu0 0.0
        %508 = vmatprep.subr.mxu0 0.0
        %509 = vmatpush1.msra.mxu0 0.0
        %510 = vmatprep.subr.mxu0 0.0
        %511 = vmatpush1.msra.mxu0 0.0
        %512 = vmatprep.subr.mxu0 0.0
        %513 = vmatpush1.msra.mxu0 0.0
        %514 = vmatprep.subr.mxu0 0.0
        %515 = vmatpush1.msra.mxu0 0.0
        %516 = vmatprep.subr.mxu0 0.0
        %517 = vmatpush1.msra.mxu0 0.0
        %518 = vmatprep.subr.mxu0 0.0
        %519 = vmatpush1.msra.mxu0 0.0
        %520 = vmatprep.subr.mxu0 0.0
        %521 = vmatpush1.msra.mxu0 0.0
        %522 = vmatprep.subr.mxu0 0.0
        %523 = vmatpush1.msra.mxu0 0.0
        %524 = vmatprep.subr.mxu0 0.0
        %525 = vmatpush1.msra.mxu0 0.0
        %526 = vmatprep.subr.mxu0 0.0
        %527 = vmatpush1.msra.mxu0 0.0
        %528 = vmatprep.subr.mxu0 0.0
        %529 = vmatpush1.msra.mxu0 0.0
        %530 = vmatprep.subr.mxu0 0.0
        %531 = vmatpush1.msra.mxu0 0.0
        %532 = vmatprep.mubr.f32.mxu0 0.0
        %v533 = vand.u32 %v364, 4294901760
        %534 = vmatmul.mubr.f32.gmra.mrb[0].mxu0 %v533
        %v535 = vpop.f32.mrb[0].mxu0
        %v536 = vadd.f32 %v443, %v535
        %v537 = vpop.f32.mrb[0].mxu0
        %v538 = vadd.f32 %v445, %v537
        %539 = vmatprep.mubr.f32.mxu0 0.0
        %v540 = vand.u32 %v367, 4294901760
        %541 = vmatmul.mubr.f32.gmra.mrb[0].mxu0 %v540
        %v542 = vpop.f32.mrb[0].mxu0
        %v543 = vadd.f32 %v454, %v542
        %v544 = vpop.f32.mrb[0].mxu0
        %v545 = vadd.f32 %v456, %v544
        %546 = vdwg.mxu0
        %v547 = vand.u32 %v361, 4294901760
        %v548 = vsub.f32 %v361, %v547
        %549 = vmatprep.subr.mxu0 %v548
        %v550 = vand.u32 %v360, 4294901760
        %v551 = vsub.f32 %v360, %v550
        %552 = vmatpush1.msra.mxu0 %v551
        %553 = vmatprep.subr.mxu0 0.0
        %554 = vmatpush1.msra.mxu0 0.0
        %555 = vmatprep.subr.mxu0 0.0
        %556 = vmatpush1.msra.mxu0 0.0
        %557 = vmatprep.subr.mxu0 0.0
        %558 = vmatpush1.msra.mxu0 0.0
        %559 = vmatprep.subr.mxu0 0.0
        %560 = vmatpush1.msra.mxu0 0.0
        %561 = vmatprep.subr.mxu0 0.0
        %562 = vmatpush1.msra.mxu0 0.0
        %563 = vmatprep.subr.mxu0 0.0
        %564 = vmatpush1.msra.mxu0 0.0
        %565 = vmatprep.subr.mxu0 0.0
        %566 = vmatpush1.msra.mxu0 0.0
        %567 = vmatprep.subr.mxu0 0.0
        %568 = vmatpush1.msra.mxu0 0.0
        %569 = vmatprep.subr.mxu0 0.0
        %570 = vmatpush1.msra.mxu0 0.0
        %571 = vmatprep.subr.mxu0 0.0
        %572 = vmatpush1.msra.mxu0 0.0
        %573 = vmatprep.subr.mxu0 0.0
        %574 = vmatpush1.msra.mxu0 0.0
        %575 = vmatprep.subr.mxu0 0.0
        %576 = vmatpush1.msra.mxu0 0.0
        %577 = vmatprep.subr.mxu0 0.0
        %578 = vmatpush1.msra.mxu0 0.0
        %579 = vmatprep.subr.mxu0 0.0
        %580 = vmatpush1.msra.mxu0 0.0
        %581 = vmatprep.subr.mxu0 0.0
        %582 = vmatpush1.msra.mxu0 0.0
        %583 = vmatprep.subr.mxu0 0.0
        %584 = vmatpush1.msra.mxu0 0.0
        %585 = vmatprep.subr.mxu0 0.0
        %586 = vmatpush1.msra.mxu0 0.0
        %587 = vmatprep.subr.mxu0 0.0
        %588 = vmatpush1.msra.mxu0 0.0
        %589 = vmatprep.subr.mxu0 0.0
        %590 = vmatpush1.msra.mxu0 0.0
        %591 = vmatprep.subr.mxu0 0.0
        %592 = vmatpush1.msra.mxu0 0.0
        %593 = vmatprep.subr.mxu0 0.0
        %594 = vmatpush1.msra.mxu0 0.0
        %595 = vmatprep.subr.mxu0 0.0
        %596 = vmatpush1.msra.mxu0 0.0
        %597 = vmatprep.subr.mxu0 0.0
        %598 = vmatpush1.msra.mxu0 0.0
        %599 = vmatprep.subr.mxu0 0.0
        %600 = vmatpush1.msra.mxu0 0.0
        %601 = vmatprep.subr.mxu0 0.0
        %602 = vmatpush1.msra.mxu0 0.0
        %603 = vmatprep.subr.mxu0 0.0
        %604 = vmatpush1.msra.mxu0 0.0
        %605 = vmatprep.subr.mxu0 0.0
        %606 = vmatpush1.msra.mxu0 0.0
        %607 = vmatprep.subr.mxu0 0.0
        %608 = vmatpush1.msra.mxu0 0.0
        %609 = vmatprep.subr.mxu0 0.0
        %610 = vmatpush1.msra.mxu0 0.0
        %611 = vmatprep.subr.mxu0 0.0
        %612 = vmatpush1.msra.mxu0 0.0
        %613 = vmatprep.subr.mxu0 0.0
        %614 = vmatpush1.msra.mxu0 0.0
        %615 = vmatprep.mubr.f32.mxu0 0.0
        %v616 = vand.u32 %v364, 4294901760
        %v617 = vsub.f32 %v364, %v616
        %618 = vmatmul.mubr.f32.gmra.mrb[0].mxu0 %v617
        %v619 = vpop.f32.mrb[0].mxu0
        %v620 = vadd.f32 %v536, %v619
        %v621 = vpop.f32.mrb[0].mxu0
        %v622 = vadd.f32 %v538, %v621
        %623 = vmatprep.mubr.f32.mxu0 0.0
        %v624 = vand.u32 %v367, 4294901760
        %v625 = vsub.f32 %v367, %v624
        %626 = vmatmul.mubr.f32.gmra.mrb[0].mxu0 %v625
        %v627 = vpop.f32.mrb[0].mxu0
        %v628 = vadd.f32 %v543, %v627
        %v629 = vpop.f32.mrb[0].mxu0
        %v630 = vadd.f32 %v545, %v629
        %631 = vdwg.mxu0
        %v632 = vand.u32 %v361, 4294901760
        %633 = vmatprep.subr.mxu0 %v632
        %v634 = vand.u32 %v360, 4294901760
        %635 = vmatpush1.msra.mxu0 %v634
        %636 = vmatprep.subr.mxu0 0.0
        %637 = vmatpush1.msra.mxu0 0.0
        %638 = vmatprep.subr.mxu0 0.0
        %639 = vmatpush1.msra.mxu0 0.0
        %640 = vmatprep.subr.mxu0 0.0
        %641 = vmatpush1.msra.mxu0 0.0
        %642 = vmatprep.subr.mxu0 0.0
        %643 = vmatpush1.msra.mxu0 0.0
        %644 = vmatprep.subr.mxu0 0.0
        %645 = vmatpush1.msra.mxu0 0.0
        %646 = vmatprep.subr.mxu0 0.0
        %647 = vmatpush1.msra.mxu0 0.0
        %648 = vmatprep.subr.mxu0 0.0
        %649 = vmatpush1.msra.mxu0 0.0
        %650 = vmatprep.subr.mxu0 0.0
        %651 = vmatpush1.msra.mxu0 0.0
        %652 = vmatprep.subr.mxu0 0.0
        %653 = vmatpush1.msra.mxu0 0.0
        %654 = vmatprep.subr.mxu0 0.0
        %655 = vmatpush1.msra.mxu0 0.0
        %656 = vmatprep.subr.mxu0 0.0
        %657 = vmatpush1.msra.mxu0 0.0
        %658 = vmatprep.subr.mxu0 0.0
        %659 = vmatpush1.msra.mxu0 0.0
        %660 = vmatprep.subr.mxu0 0.0
        %661 = vmatpush1.msra.mxu0 0.0
        %662 = vmatprep.subr.mxu0 0.0
        %663 = vmatpush1.msra.mxu0 0.0
        %664 = vmatprep.subr.mxu0 0.0
        %665 = vmatpush1.msra.mxu0 0.0
        %666 = vmatprep.subr.mxu0 0.0
        %667 = vmatpush1.msra.mxu0 0.0
        %668 = vmatprep.subr.mxu0 0.0
        %669 = vmatpush1.msra.mxu0 0.0
        %670 = vmatprep.subr.mxu0 0.0
        %671 = vmatpush1.msra.mxu0 0.0
        %672 = vmatprep.subr.mxu0 0.0
        %673 = vmatpush1.msra.mxu0 0.0
        %674 = vmatprep.subr.mxu0 0.0
        %675 = vmatpush1.msra.mxu0 0.0
        %676 = vmatprep.subr.mxu0 0.0
        %677 = vmatpush1.msra.mxu0 0.0
        %678 = vmatprep.subr.mxu0 0.0
        %679 = vmatpush1.msra.mxu0 0.0
        %680 = vmatprep.subr.mxu0 0.0
        %681 = vmatpush1.msra.mxu0 0.0
        %682 = vmatprep.subr.mxu0 0.0
        %683 = vmatpush1.msra.mxu0 0.0
        %684 = vmatprep.subr.mxu0 0.0
        %685 = vmatpush1.msra.mxu0 0.0
        %686 = vmatprep.subr.mxu0 0.0
        %687 = vmatpush1.msra.mxu0 0.0
        %688 = vmatprep.subr.mxu0 0.0
        %689 = vmatpush1.msra.mxu0 0.0
        %690 = vmatprep.subr.mxu0 0.0
        %691 = vmatpush1.msra.mxu0 0.0
        %692 = vmatprep.subr.mxu0 0.0
        %693 = vmatpush1.msra.mxu0 0.0
        %694 = vmatprep.subr.mxu0 0.0
        %695 = vmatpush1.msra.mxu0 0.0
        %696 = vmatprep.subr.mxu0 0.0
        %697 = vmatpush1.msra.mxu0 0.0
        %698 = vmatprep.mubr.f32.mxu0 0.0
        %v699 = vand.u32 %v364, 4294901760
        %v700 = vsub.f32 %v364, %v699
        %v701 = vand.u32 %v700, 4294901760
        %702 = vmatmul.mubr.f32.gmra.mrb[0].mxu0 %v701
        %v703 = vpop.f32.mrb[0].mxu0
        %v704 = vadd.f32 %v620, %v703
        %v705 = vpop.f32.mrb[0].mxu0
        %v706 = vadd.f32 %v622, %v705
        %707 = vmatprep.mubr.f32.mxu0 0.0
        %v708 = vand.u32 %v367, 4294901760
        %v709 = vsub.f32 %v367, %v708
        %v710 = vand.u32 %v709, 4294901760
        %711 = vmatmul.mubr.f32.gmra.mrb[0].mxu0 %v710
        %v712 = vpop.f32.mrb[0].mxu0
        %v713 = vadd.f32 %v628, %v712
        %v714 = vpop.f32.mrb[0].mxu0
        %v715 = vadd.f32 %v630, %v714
        %716 = vdwg.mxu0
        %v717 = vand.u32 %v361, 4294901760
        %v718 = vsub.f32 %v361, %v717
        %v719 = vand.u32 %v718, 4294901760
        %720 = vmatprep.subr.mxu0 %v719
        %v721 = vand.u32 %v360, 4294901760
        %v722 = vsub.f32 %v360, %v721
        %v723 = vand.u32 %v722, 4294901760
        %724 = vmatpush1.msra.mxu0 %v723
        %725 = vmatprep.subr.mxu0 0.0
        %726 = vmatpush1.msra.mxu0 0.0
        %727 = vmatprep.subr.mxu0 0.0
        %728 = vmatpush1.msra.mxu0 0.0
        %729 = vmatprep.subr.mxu0 0.0
        %730 = vmatpush1.msra.mxu0 0.0
        %731 = vmatprep.subr.mxu0 0.0
        %732 = vmatpush1.msra.mxu0 0.0
        %733 = vmatprep.subr.mxu0 0.0
        %734 = vmatpush1.msra.mxu0 0.0
        %735 = vmatprep.subr.mxu0 0.0
        %736 = vmatpush1.msra.mxu0 0.0
        %737 = vmatprep.subr.mxu0 0.0
        %738 = vmatpush1.msra.mxu0 0.0
        %739 = vmatprep.subr.mxu0 0.0
        %740 = vmatpush1.msra.mxu0 0.0
        %741 = vmatprep.subr.mxu0 0.0
        %742 = vmatpush1.msra.mxu0 0.0
        %743 = vmatprep.subr.mxu0 0.0
        %744 = vmatpush1.msra.mxu0 0.0
        %745 = vmatprep.subr.mxu0 0.0
        %746 = vmatpush1.msra.mxu0 0.0
        %747 = vmatprep.subr.mxu0 0.0
        %748 = vmatpush1.msra.mxu0 0.0
        %749 = vmatprep.subr.mxu0 0.0
        %750 = vmatpush1.msra.mxu0 0.0
        %751 = vmatprep.subr.mxu0 0.0
        %752 = vmatpush1.msra.mxu0 0.0
        %753 = vmatprep.subr.mxu0 0.0
        %754 = vmatpush1.msra.mxu0 0.0
        %755 = vmatprep.subr.mxu0 0.0
        %756 = vmatpush1.msra.mxu0 0.0
        %757 = vmatprep.subr.mxu0 0.0
        %758 = vmatpush1.msra.mxu0 0.0
        %759 = vmatprep.subr.mxu0 0.0
        %760 = vmatpush1.msra.mxu0 0.0
        %761 = vmatprep.subr.mxu0 0.0
        %762 = vmatpush1.msra.mxu0 0.0
        %763 = vmatprep.subr.mxu0 0.0
        %764 = vmatpush1.msra.mxu0 0.0
        %765 = vmatprep.subr.mxu0 0.0
        %766 = vmatpush1.msra.mxu0 0.0
        %767 = vmatprep.subr.mxu0 0.0
        %768 = vmatpush1.msra.mxu0 0.0
        %769 = vmatprep.subr.mxu0 0.0
        %770 = vmatpush1.msra.mxu0 0.0
        %771 = vmatprep.subr.mxu0 0.0
        %772 = vmatpush1.msra.mxu0 0.0
        %773 = vmatprep.subr.mxu0 0.0
        %774 = vmatpush1.msra.mxu0 0.0
        %775 = vmatprep.subr.mxu0 0.0
        %776 = vmatpush1.msra.mxu0 0.0
        %777 = vmatprep.subr.mxu0 0.0
        %778 = vmatpush1.msra.mxu0 0.0
        %779 = vmatprep.subr.mxu0 0.0
        %780 = vmatpush1.msra.mxu0 0.0
        %781 = vmatprep.subr.mxu0 0.0
        %782 = vmatpush1.msra.mxu0 0.0
        %783 = vmatprep.subr.mxu0 0.0
        %784 = vmatpush1.msra.mxu0 0.0
        %785 = vmatprep.subr.mxu0 0.0
        %786 = vmatpush1.msra.mxu0 0.0
        %787 = vmatprep.mubr.f32.mxu0 0.0
        %v788 = vand.u32 %v364, 4294901760
        %789 = vmatmul.mubr.f32.gmra.mrb[0].mxu0 %v788
        %v790 = vpop.f32.mrb[0].mxu0
        %v791 = vadd.f32 %v704, %v790
        %v792 = vpop.f32.mrb[0].mxu0
        %v793 = vadd.f32 %v706, %v792
        %794 = vmatprep.mubr.f32.mxu0 0.0
        %v795 = vand.u32 %v367, 4294901760
        %796 = vmatmul.mubr.f32.gmra.mrb[0].mxu0 %v795
        %v797 = vpop.f32.mrb[0].mxu0
        %v798 = vadd.f32 %v713, %v797
        %v799 = vpop.f32.mrb[0].mxu0
        %v800 = vadd.f32 %v715, %v799
        %801 = vdwg.mxu0
        %v802 = vand.u32 %v361, 4294901760
        %803 = vmatprep.subr.mxu0 %v802
        %v804 = vand.u32 %v360, 4294901760
        %805 = vmatpush1.msra.mxu0 %v804
        %806 = vmatprep.subr.mxu0 0.0
        %807 = vmatpush1.msra.mxu0 0.0
        %808 = vmatprep.subr.mxu0 0.0
        %809 = vmatpush1.msra.mxu0 0.0
        %810 = vmatprep.subr.mxu0 0.0
        %811 = vmatpush1.msra.mxu0 0.0
        %812 = vmatprep.subr.mxu0 0.0
        %813 = vmatpush1.msra.mxu0 0.0
        %814 = vmatprep.subr.mxu0 0.0
        %815 = vmatpush1.msra.mxu0 0.0
        %816 = vmatprep.subr.mxu0 0.0
        %817 = vmatpush1.msra.mxu0 0.0
        %818 = vmatprep.subr.mxu0 0.0
        %819 = vmatpush1.msra.mxu0 0.0
        %820 = vmatprep.subr.mxu0 0.0
        %821 = vmatpush1.msra.mxu0 0.0
        %822 = vmatprep.subr.mxu0 0.0
        %823 = vmatpush1.msra.mxu0 0.0
        %824 = vmatprep.subr.mxu0 0.0
        %825 = vmatpush1.msra.mxu0 0.0
        %826 = vmatprep.subr.mxu0 0.0
        %827 = vmatpush1.msra.mxu0 0.0
        %828 = vmatprep.subr.mxu0 0.0
        %829 = vmatpush1.msra.mxu0 0.0
        %830 = vmatprep.subr.mxu0 0.0
        %831 = vmatpush1.msra.mxu0 0.0
        %832 = vmatprep.subr.mxu0 0.0
        %833 = vmatpush1.msra.mxu0 0.0
        %834 = vmatprep.subr.mxu0 0.0
        %835 = vmatpush1.msra.mxu0 0.0
        %836 = vmatprep.subr.mxu0 0.0
        %837 = vmatpush1.msra.mxu0 0.0
        %838 = vmatprep.subr.mxu0 0.0
        %839 = vmatpush1.msra.mxu0 0.0
        %840 = vmatprep.subr.mxu0 0.0
        %841 = vmatpush1.msra.mxu0 0.0
        %842 = vmatprep.subr.mxu0 0.0
        %843 = vmatpush1.msra.mxu0 0.0
        %844 = vmatprep.subr.mxu0 0.0
        %845 = vmatpush1.msra.mxu0 0.0
        %846 = vmatprep.subr.mxu0 0.0
        %847 = vmatpush1.msra.mxu0 0.0
        %848 = vmatprep.subr.mxu0 0.0
        %849 = vmatpush1.msra.mxu0 0.0
        %850 = vmatprep.subr.mxu0 0.0
        %851 = vmatpush1.msra.mxu0 0.0
        %852 = vmatprep.subr.mxu0 0.0
        %853 = vmatpush1.msra.mxu0 0.0
        %854 = vmatprep.subr.mxu0 0.0
        %855 = vmatpush1.msra.mxu0 0.0
        %856 = vmatprep.subr.mxu0 0.0
        %857 = vmatpush1.msra.mxu0 0.0
        %858 = vmatprep.subr.mxu0 0.0
        %859 = vmatpush1.msra.mxu0 0.0
        %860 = vmatprep.subr.mxu0 0.0
        %861 = vmatpush1.msra.mxu0 0.0
        %862 = vmatprep.subr.mxu0 0.0
        %863 = vmatpush1.msra.mxu0 0.0
        %864 = vmatprep.subr.mxu0 0.0
        %865 = vmatpush1.msra.mxu0 0.0
        %866 = vmatprep.subr.mxu0 0.0
        %867 = vmatpush1.msra.mxu0 0.0
        %868 = vmatprep.mubr.f32.mxu0 0.0
        %v869 = vand.u32 %v364, 4294901760
        %870 = vmatmul.mubr.f32.gmra.mrb[0].mxu0 %v869
        %v871 = vpop.f32.mrb[0].mxu0
        %v872 = vadd.f32 %v791, %v871
        %v873 = vpop.f32.mrb[0].mxu0
        %v874 = vadd.f32 %v793, %v873
        %875 = vmatprep.mubr.f32.mxu0 0.0
        %v876 = vand.u32 %v367, 4294901760
        %877 = vmatmul.mubr.f32.gmra.mrb[0].mxu0 %v876
        %v878 = vpop.f32.mrb[0].mxu0
        %v879 = vadd.f32 %v798, %v878
        %v880 = vpop.f32.mrb[0].mxu0
        %v881 = vadd.f32 %v800, %v880
        %882 = vdwg.mxu0
        %v883 = vlaneseq
        %v884 = vand.u32 %v883, 127
        %v885 = vadd.s32 %v884, 128
        %v886 = vcvt.f32.s32.to.zero.pseudo %v872
        %v887 = vcvt.f32.s32.to.zero.pseudo %v874
        %v888 = vcvt.f32.s32.to.zero.pseudo %v879
        %v889 = vcvt.f32.s32.to.zero.pseudo %v881
        %vm890 = vcmp.eq.s32.totalorder %v886, %v884
        %vm891 = vcmp.eq.s32.totalorder %v887, %v885
        %vm892 = vcmp.eq.s32.totalorder %v888, %v884
        %vm893 = vcmp.eq.s32.totalorder %v889, %v885
        %v894 = vsel %vm890, 1.0, 0.0
        %v895 = vsel %vm891, 1.0, 0.0
        %v896 = vsel %vm892, 1.0, 0.0
        %v897 = vsel %vm893, 1.0, 0.0
        %v898 = vpack.c.bf16 %v896, %v894
        %v899 = vpack.c.bf16 %v897, %v895
        %v900 = vld [vmem:[#allocation5] sm:$0xf]
        %v901 = vld [vmem:[#allocation5 + $0x4] sm:$0xf]
        %v902 = vld [vmem:[#allocation5 + $0x8] sm:$0xf]
        %v903 = vld [vmem:[#allocation5 + $0xc] sm:$0xf]
        %v904 = vld [vmem:[#allocation5 + $0x10] sm:$0xf]
        %v905 = vld [vmem:[#allocation5 + $0x14] sm:$0xf]
        %v906 = vld [vmem:[#allocation5 + $0x18] sm:$0xf]
        %v907 = vld [vmem:[#allocation5 + $0x1c] sm:$0xf]
        %v908 = vld [vmem:[#allocation5 + $0x20] sm:$0xf]
        %v909 = vld [vmem:[#allocation5 + $0x24] sm:$0xf]
        %v910 = vld [vmem:[#allocation5 + $0x28] sm:$0xf]
        %v911 = vld [vmem:[#allocation5 + $0x2c] sm:$0xf]
        %v912 = vld [vmem:[#allocation5 + $0x30] sm:$0xf]
        %v913 = vld [vmem:[#allocation5 + $0x34] sm:$0xf]
        %v914 = vld [vmem:[#allocation5 + $0x38] sm:$0xf]
        %v915 = vld [vmem:[#allocation5 + $0x3c] sm:$0xf]
        %v916 = vld [vmem:[#allocation5 + $0x40] sm:$0xf]
        %v917 = vld [vmem:[#allocation5 + $0x44] sm:$0xf]
        %v918 = vld [vmem:[#allocation5 + $0x48] sm:$0xf]
        %v919 = vld [vmem:[#allocation5 + $0x4c] sm:$0xf]
        %v920 = vld [vmem:[#allocation5 + $0x50] sm:$0xf]
        %v921 = vld [vmem:[#allocation5 + $0x54] sm:$0xf]
        %v922 = vld [vmem:[#allocation5 + $0x58] sm:$0xf]
        %v923 = vld [vmem:[#allocation5 + $0x5c] sm:$0xf]
        %v924 = vld [vmem:[#allocation5 + $0x60] sm:$0xf]
        %v925 = vld [vmem:[#allocation5 + $0x64] sm:$0xf]
        %v926 = vld [vmem:[#allocation5 + $0x68] sm:$0xf]
        %v927 = vld [vmem:[#allocation5 + $0x6c] sm:$0xf]
        %v928 = vld [vmem:[#allocation5 + $0x70] sm:$0xf]
        %v929 = vld [vmem:[#allocation5 + $0x74] sm:$0xf]
        %v930 = vld [vmem:[#allocation5 + $0x78] sm:$0xf]
        %v931 = vld [vmem:[#allocation5 + $0x7c] sm:$0xf]
        %v932 = vld [vmem:[#allocation7] sm:$0xf]
        %v933 = vld [vmem:[#allocation7 + $0x4] sm:$0xf]
        %v934 = vld [vmem:[#allocation7 + $0x8] sm:$0xf]
        %v935 = vld [vmem:[#allocation7 + $0xc] sm:$0xf]
        %v936 = vld [vmem:[#allocation7 + $0x10] sm:$0xf]
        %v937 = vld [vmem:[#allocation7 + $0x14] sm:$0xf]
        %v938 = vld [vmem:[#allocation7 + $0x18] sm:$0xf]
        %v939 = vld [vmem:[#allocation7 + $0x1c] sm:$0xf]
        %v940 = vld [vmem:[#allocation7 + $0x20] sm:$0xf]
        %v941 = vld [vmem:[#allocation7 + $0x24] sm:$0xf]
        %v942 = vld [vmem:[#allocation7 + $0x28] sm:$0xf]
        %v943 = vld [vmem:[#allocation7 + $0x2c] sm:$0xf]
        %v944 = vld [vmem:[#allocation7 + $0x30] sm:$0xf]
        %v945 = vld [vmem:[#allocation7 + $0x34] sm:$0xf]
        %v946 = vld [vmem:[#allocation7 + $0x38] sm:$0xf]
        %v947 = vld [vmem:[#allocation7 + $0x3c] sm:$0xf]
        %v948 = vld [vmem:[#allocation7 + $0x40] sm:$0xf]
        %v949 = vld [vmem:[#allocation7 + $0x44] sm:$0xf]
        %v950 = vld [vmem:[#allocation7 + $0x48] sm:$0xf]
        %v951 = vld [vmem:[#allocation7 + $0x4c] sm:$0xf]
        %v952 = vld [vmem:[#allocation7 + $0x50] sm:$0xf]
        %v953 = vld [vmem:[#allocation7 + $0x54] sm:$0xf]
        %v954 = vld [vmem:[#allocation7 + $0x58] sm:$0xf]
        %v955 = vld [vmem:[#allocation7 + $0x5c] sm:$0xf]
        %v956 = vld [vmem:[#allocation7 + $0x60] sm:$0xf]
        %v957 = vld [vmem:[#allocation7 + $0x64] sm:$0xf]
        %v958 = vld [vmem:[#allocation7 + $0x68] sm:$0xf]
        %v959 = vld [vmem:[#allocation7 + $0x6c] sm:$0xf]
        %v960 = vld [vmem:[#allocation7 + $0x70] sm:$0xf]
        %v961 = vld [vmem:[#allocation7 + $0x74] sm:$0xf]
        %v962 = vld [vmem:[#allocation7 + $0x78] sm:$0xf]
        %v963 = vld [vmem:[#allocation7 + $0x7c] sm:$0xf]
        %v996 = vunpack.c.l.b16 %v932
        %v997 = vunpack.c.l.b16 %v933
        %v998 = vunpack.c.l.b16 %v934
        %v999 = vunpack.c.l.b16 %v935
        %v1000 = vunpack.c.l.b16 %v936
        %v1001 = vunpack.c.l.b16 %v937
        %v1002 = vunpack.c.l.b16 %v938
        %v1003 = vunpack.c.l.b16 %v939
        %v1004 = vunpack.c.l.b16 %v940
        %v1005 = vunpack.c.l.b16 %v941
        %v1006 = vunpack.c.l.b16 %v942
        %v1007 = vunpack.c.l.b16 %v943
        %v1008 = vunpack.c.l.b16 %v944
        %v1009 = vunpack.c.l.b16 %v945
        %v1010 = vunpack.c.l.b16 %v946
        %v1011 = vunpack.c.l.b16 %v947
        %v1012 = vunpack.c.l.b16 %v948
        %v1013 = vunpack.c.l.b16 %v949
        %v1014 = vunpack.c.l.b16 %v950
        %v1015 = vunpack.c.l.b16 %v951
        %v1016 = vunpack.c.l.b16 %v952
        %v1017 = vunpack.c.l.b16 %v953
        %v1018 = vunpack.c.l.b16 %v954
        %v1019 = vunpack.c.l.b16 %v955
        %v1020 = vunpack.c.l.b16 %v956
        %v1021 = vunpack.c.l.b16 %v957
        %v1022 = vunpack.c.l.b16 %v958
        %v1023 = vunpack.c.l.b16 %v959
        %v1024 = vunpack.c.l.b16 %v960
        %v1025 = vunpack.c.l.b16 %v961
        %v1026 = vunpack.c.l.b16 %v962
        %v1027 = vunpack.c.l.b16 %v963
        %v1028 = vpack.c.b16 %v997, %v996
        %v1029 = vpack.c.b16 %v999, %v998
        %v1030 = vpack.c.b16 %v1001, %v1000
        %v1031 = vpack.c.b16 %v1003, %v1002
        %v1032 = vpack.c.b16 %v1005, %v1004
        %v1033 = vpack.c.b16 %v1007, %v1006
        %v1034 = vpack.c.b16 %v1009, %v1008
        %v1035 = vpack.c.b16 %v1011, %v1010
        %v1036 = vpack.c.b16 %v1013, %v1012
        %v1037 = vpack.c.b16 %v1015, %v1014
        %v1038 = vpack.c.b16 %v1017, %v1016
        %v1039 = vpack.c.b16 %v1019, %v1018
        %v1040 = vpack.c.b16 %v1021, %v1020
        %v1041 = vpack.c.b16 %v1023, %v1022
        %v1042 = vpack.c.b16 %v1025, %v1024
        %v1043 = vpack.c.b16 %v1027, %v1026
        %1060 = vmatprep.subr.bf16.mxu0 0
        %1061 = vmatpush1.bf16.msra.mxu0 %v1028
        %1062 = vmatprep.subr.bf16.mxu0 0
        %1063 = vmatpush1.bf16.msra.mxu0 %v1029
        %1064 = vmatprep.subr.bf16.mxu0 0
        %1065 = vmatpush1.bf16.msra.mxu0 %v1030
        %1066 = vmatprep.subr.bf16.mxu0 0
        %1067 = vmatpush1.bf16.msra.mxu0 %v1031
        %1068 = vmatprep.subr.bf16.mxu0 0
        %1069 = vmatpush1.bf16.msra.mxu0 %v1032
        %1070 = vmatprep.subr.bf16.mxu0 0
        %1071 = vmatpush1.bf16.msra.mxu0 %v1033
        %1072 = vmatprep.subr.bf16.mxu0 0
        %1073 = vmatpush1.bf16.msra.mxu0 %v1034
        %1074 = vmatprep.subr.bf16.mxu0 0
        %1075 = vmatpush1.bf16.msra.mxu0 %v1035
        %1076 = vmatprep.subr.bf16.mxu0 0
        %1077 = vmatpush1.bf16.msra.mxu0 %v1036
        %1078 = vmatprep.subr.bf16.mxu0 0
        %1079 = vmatpush1.bf16.msra.mxu0 %v1037
        %1080 = vmatprep.subr.bf16.mxu0 0
        %1081 = vmatpush1.bf16.msra.mxu0 %v1038
        %1082 = vmatprep.subr.bf16.mxu0 0
        %1083 = vmatpush1.bf16.msra.mxu0 %v1039
        %1084 = vmatprep.subr.bf16.mxu0 0
        %1085 = vmatpush1.bf16.msra.mxu0 %v1040
        %1086 = vmatprep.subr.bf16.mxu0 0
        %1087 = vmatpush1.bf16.msra.mxu0 %v1041
        %1088 = vmatprep.subr.bf16.mxu0 0
        %1089 = vmatpush1.bf16.msra.mxu0 %v1042
        %1090 = vmatprep.subr.bf16.mxu0 0
        %1091 = vmatpush1.bf16.msra.mxu0 %v1043
        %1092 = vmatprep.mubr.bf16.mxu0 %v899
        %1093 = vmatmul.mubr.bf16.gmra.mrb[0].mxu0 %v898
        %v1094 = vpop.f32.mrb[0].mxu0
        %v1095 = vadd.f32 0.0, %v1094
        %v1096 = vpop.f32.mrb[0].mxu0
        %v1097 = vpop.f32.mrb[0].mxu0
        %v1098 = vadd.f32 0.0, %v1097
        %v1099 = vpop.f32.mrb[0].mxu0
        %1100 = vdwg.mxu0
        %v1133 = vunpack.c.l.b16 %v900
        %v1134 = vunpack.c.l.b16 %v901
        %v1135 = vunpack.c.l.b16 %v902
        %v1136 = vunpack.c.l.b16 %v903
        %v1137 = vunpack.c.l.b16 %v904
        %v1138 = vunpack.c.l.b16 %v905
        %v1139 = vunpack.c.l.b16 %v906
        %v1140 = vunpack.c.l.b16 %v907
        %v1141 = vunpack.c.l.b16 %v908
        %v1142 = vunpack.c.l.b16 %v909
        %v1143 = vunpack.c.l.b16 %v910
        %v1144 = vunpack.c.l.b16 %v911
        %v1145 = vunpack.c.l.b16 %v912
        %v1146 = vunpack.c.l.b16 %v913
        %v1147 = vunpack.c.l.b16 %v914
        %v1148 = vunpack.c.l.b16 %v915
        %v1149 = vunpack.c.l.b16 %v916
        %v1150 = vunpack.c.l.b16 %v917
        %v1151 = vunpack.c.l.b16 %v918
        %v1152 = vunpack.c.l.b16 %v919
        %v1153 = vunpack.c.l.b16 %v920
        %v1154 = vunpack.c.l.b16 %v921
        %v1155 = vunpack.c.l.b16 %v922
        %v1156 = vunpack.c.l.b16 %v923
        %v1157 = vunpack.c.l.b16 %v924
        %v1158 = vunpack.c.l.b16 %v925
        %v1159 = vunpack.c.l.b16 %v926
        %v1160 = vunpack.c.l.b16 %v927
        %v1161 = vunpack.c.l.b16 %v928
        %v1162 = vunpack.c.l.b16 %v929
        %v1163 = vunpack.c.l.b16 %v930
        %v1164 = vunpack.c.l.b16 %v931
        %v1165 = vpack.c.b16 %v1134, %v1133
        %v1166 = vpack.c.b16 %v1136, %v1135
        %v1167 = vpack.c.b16 %v1138, %v1137
        %v1168 = vpack.c.b16 %v1140, %v1139
        %v1169 = vpack.c.b16 %v1142, %v1141
        %v1170 = vpack.c.b16 %v1144, %v1143
        %v1171 = vpack.c.b16 %v1146, %v1145
        %v1172 = vpack.c.b16 %v1148, %v1147
        %v1173 = vpack.c.b16 %v1150, %v1149
        %v1174 = vpack.c.b16 %v1152, %v1151
        %v1175 = vpack.c.b16 %v1154, %v1153
        %v1176 = vpack.c.b16 %v1156, %v1155
        %v1177 = vpack.c.b16 %v1158, %v1157
        %v1178 = vpack.c.b16 %v1160, %v1159
        %v1179 = vpack.c.b16 %v1162, %v1161
        %v1180 = vpack.c.b16 %v1164, %v1163
        %1197 = vmatprep.subr.bf16.mxu0 0
        %1198 = vmatpush1.bf16.msra.mxu0 %v1165
        %1199 = vmatprep.subr.bf16.mxu0 0
        %1200 = vmatpush1.bf16.msra.mxu0 %v1166
        %1201 = vmatprep.subr.bf16.mxu0 0
        %1202 = vmatpush1.bf16.msra.mxu0 %v1167
        %1203 = vmatprep.subr.bf16.mxu0 0
        %1204 = vmatpush1.bf16.msra.mxu0 %v1168
        %1205 = vmatprep.subr.bf16.mxu0 0
        %1206 = vmatpush1.bf16.msra.mxu0 %v1169
        %1207 = vmatprep.subr.bf16.mxu0 0
        %1208 = vmatpush1.bf16.msra.mxu0 %v1170
        %1209 = vmatprep.subr.bf16.mxu0 0
        %1210 = vmatpush1.bf16.msra.mxu0 %v1171
        %1211 = vmatprep.subr.bf16.mxu0 0
        %1212 = vmatpush1.bf16.msra.mxu0 %v1172
        %1213 = vmatprep.subr.bf16.mxu0 0
        %1214 = vmatpush1.bf16.msra.mxu0 %v1173
        %1215 = vmatprep.subr.bf16.mxu0 0
        %1216 = vmatpush1.bf16.msra.mxu0 %v1174
        %1217 = vmatprep.subr.bf16.mxu0 0
        %1218 = vmatpush1.bf16.msra.mxu0 %v1175
        %1219 = vmatprep.subr.bf16.mxu0 0
        %1220 = vmatpush1.bf16.msra.mxu0 %v1176
        %1221 = vmatprep.subr.bf16.mxu0 0
        %1222 = vmatpush1.bf16.msra.mxu0 %v1177
        %1223 = vmatprep.subr.bf16.mxu0 0
        %1224 = vmatpush1.bf16.msra.mxu0 %v1178
        %1225 = vmatprep.subr.bf16.mxu0 0
        %1226 = vmatpush1.bf16.msra.mxu0 %v1179
        %1227 = vmatprep.subr.bf16.mxu0 0
        %1228 = vmatpush1.bf16.msra.mxu0 %v1180
        %1229 = vmatprep.mubr.bf16.mxu0 %v899
        %1230 = vmatmul.mubr.bf16.gmra.mrb[0].mxu0 %v898
        %v1231 = vpop.f32.mrb[0].mxu0
        %v1232 = vadd.f32 %v1095, %v1231
        %v1233 = vpop.f32.mrb[0].mxu0
        %v1234 = vpop.f32.mrb[0].mxu0
        %v1235 = vadd.f32 %v1098, %v1234
        %v1236 = vpop.f32.mrb[0].mxu0
        %1237 = vdwg.mxu0
        %v1238 = vld [vmem:[%s5] sm:$0xf]
        %v1239 = vld [vmem:[%s5 + $0x4] sm:$0xf]
        %v1240 = vld [vmem:[%s5 + $0x8] sm:$0xf]
        %v1241 = vld [vmem:[%s5 + $0xc] sm:$0xf]
        %v1242 = vld [vmem:[%s5 + $0x10] sm:$0xf]
        %v1243 = vld [vmem:[%s5 + $0x14] sm:$0xf]
        %v1244 = vld [vmem:[%s5 + $0x18] sm:$0xf]
        %v1245 = vld [vmem:[%s5 + $0x1c] sm:$0xf]
        %v1246 = vld [vmem:[%s5 + $0x20] sm:$0xf]
        %v1247 = vld [vmem:[%s5 + $0x24] sm:$0xf]
        %v1248 = vld [vmem:[%s5 + $0x28] sm:$0xf]
        %v1249 = vld [vmem:[%s5 + $0x2c] sm:$0xf]
        %v1250 = vld [vmem:[%s5 + $0x30] sm:$0xf]
        %v1251 = vld [vmem:[%s5 + $0x34] sm:$0xf]
        %v1252 = vld [vmem:[%s5 + $0x38] sm:$0xf]
        %v1253 = vld [vmem:[%s5 + $0x3c] sm:$0xf]
        %v1254 = vld [vmem:[%s5 + $0x40] sm:$0xf]
        %v1255 = vld [vmem:[%s5 + $0x44] sm:$0xf]
        %v1256 = vld [vmem:[%s5 + $0x48] sm:$0xf]
        %v1257 = vld [vmem:[%s5 + $0x4c] sm:$0xf]
        %v1258 = vld [vmem:[%s5 + $0x50] sm:$0xf]
        %v1259 = vld [vmem:[%s5 + $0x54] sm:$0xf]
        %v1260 = vld [vmem:[%s5 + $0x58] sm:$0xf]
        %v1261 = vld [vmem:[%s5 + $0x5c] sm:$0xf]
        %v1262 = vld [vmem:[%s5 + $0x60] sm:$0xf]
        %v1263 = vld [vmem:[%s5 + $0x64] sm:$0xf]
        %v1264 = vld [vmem:[%s5 + $0x68] sm:$0xf]
        %v1265 = vld [vmem:[%s5 + $0x6c] sm:$0xf]
        %v1266 = vld [vmem:[%s5 + $0x70] sm:$0xf]
        %v1267 = vld [vmem:[%s5 + $0x74] sm:$0xf]
        %v1268 = vld [vmem:[%s5 + $0x78] sm:$0xf]
        %v1269 = vld [vmem:[%s5 + $0x7c] sm:$0xf]
        %v1302 = vunpack.c.l.b16 %v1238
        %v1303 = vunpack.c.l.b16 %v1239
        %v1304 = vunpack.c.l.b16 %v1240
        %v1305 = vunpack.c.l.b16 %v1241
        %v1306 = vunpack.c.l.b16 %v1242
        %v1307 = vunpack.c.l.b16 %v1243
        %v1308 = vunpack.c.l.b16 %v1244
        %v1309 = vunpack.c.l.b16 %v1245
        %v1310 = vunpack.c.l.b16 %v1246
        %v1311 = vunpack.c.l.b16 %v1247
        %v1312 = vunpack.c.l.b16 %v1248
        %v1313 = vunpack.c.l.b16 %v1249
        %v1314 = vunpack.c.l.b16 %v1250
        %v1315 = vunpack.c.l.b16 %v1251
        %v1316 = vunpack.c.l.b16 %v1252
        %v1317 = vunpack.c.l.b16 %v1253
        %v1318 = vunpack.c.l.b16 %v1254
        %v1319 = vunpack.c.l.b16 %v1255
        %v1320 = vunpack.c.l.b16 %v1256
        %v1321 = vunpack.c.l.b16 %v1257
        %v1322 = vunpack.c.l.b16 %v1258
        %v1323 = vunpack.c.l.b16 %v1259
        %v1324 = vunpack.c.l.b16 %v1260
        %v1325 = vunpack.c.l.b16 %v1261
        %v1326 = vunpack.c.l.b16 %v1262
        %v1327 = vunpack.c.l.b16 %v1263
        %v1328 = vunpack.c.l.b16 %v1264
        %v1329 = vunpack.c.l.b16 %v1265
        %v1330 = vunpack.c.l.b16 %v1266
        %v1331 = vunpack.c.l.b16 %v1267
        %v1332 = vunpack.c.l.b16 %v1268
        %v1333 = vunpack.c.l.b16 %v1269
        %v1334 = vpack.c.b16 %v1303, %v1302
        %v1335 = vpack.c.b16 %v1305, %v1304
        %v1336 = vpack.c.b16 %v1307, %v1306
        %v1337 = vpack.c.b16 %v1309, %v1308
        %v1338 = vpack.c.b16 %v1311, %v1310
        %v1339 = vpack.c.b16 %v1313, %v1312
        %v1340 = vpack.c.b16 %v1315, %v1314
        %v1341 = vpack.c.b16 %v1317, %v1316
        %v1342 = vpack.c.b16 %v1319, %v1318
        %v1343 = vpack.c.b16 %v1321, %v1320
        %v1344 = vpack.c.b16 %v1323, %v1322
        %v1345 = vpack.c.b16 %v1325, %v1324
        %v1346 = vpack.c.b16 %v1327, %v1326
        %v1347 = vpack.c.b16 %v1329, %v1328
        %v1348 = vpack.c.b16 %v1331, %v1330
        %v1349 = vpack.c.b16 %v1333, %v1332
        %1366 = vmatprep.subr.bf16.mxu0 0
        %1367 = vmatpush1.bf16.msra.mxu0 %v1334
        %1368 = vmatprep.subr.bf16.mxu0 0
        %1369 = vmatpush1.bf16.msra.mxu0 %v1335
        %1370 = vmatprep.subr.bf16.mxu0 0
        %1371 = vmatpush1.bf16.msra.mxu0 %v1336
        %1372 = vmatprep.subr.bf16.mxu0 0
        %1373 = vmatpush1.bf16.msra.mxu0 %v1337
        %1374 = vmatprep.subr.bf16.mxu0 0
        %1375 = vmatpush1.bf16.msra.mxu0 %v1338
        %1376 = vmatprep.subr.bf16.mxu0 0
        %1377 = vmatpush1.bf16.msra.mxu0 %v1339
        %1378 = vmatprep.subr.bf16.mxu0 0
        %1379 = vmatpush1.bf16.msra.mxu0 %v1340
        %1380 = vmatprep.subr.bf16.mxu0 0
        %1381 = vmatpush1.bf16.msra.mxu0 %v1341
        %1382 = vmatprep.subr.bf16.mxu0 0
        %1383 = vmatpush1.bf16.msra.mxu0 %v1342
        %1384 = vmatprep.subr.bf16.mxu0 0
        %1385 = vmatpush1.bf16.msra.mxu0 %v1343
        %1386 = vmatprep.subr.bf16.mxu0 0
        %1387 = vmatpush1.bf16.msra.mxu0 %v1344
        %1388 = vmatprep.subr.bf16.mxu0 0
        %1389 = vmatpush1.bf16.msra.mxu0 %v1345
        %1390 = vmatprep.subr.bf16.mxu0 0
        %1391 = vmatpush1.bf16.msra.mxu0 %v1346
        %1392 = vmatprep.subr.bf16.mxu0 0
        %1393 = vmatpush1.bf16.msra.mxu0 %v1347
        %1394 = vmatprep.subr.bf16.mxu0 0
        %1395 = vmatpush1.bf16.msra.mxu0 %v1348
        %1396 = vmatprep.subr.bf16.mxu0 0
        %1397 = vmatpush1.bf16.msra.mxu0 %v1349
        %1398 = vmatprep.mubr.bf16.mxu0 %v899
        %1399 = vmatmul.mubr.bf16.gmra.mrb[0].mxu0 %v898
        %v1400 = vpop.f32.mrb[0].mxu0
        %v1401 = vadd.f32 0.0, %v1400
        %v1402 = vpop.f32.mrb[0].mxu0
        %v1403 = vpop.f32.mrb[0].mxu0
        %v1404 = vadd.f32 0.0, %v1403
        %v1405 = vpop.f32.mrb[0].mxu0
        %1406 = vdwg.mxu0
        %v1407 = vadd.f32 %v1232, %v1401
        %v1408 = vadd.f32 %v1235, %v1404
        %v1409 = vld [vmem:[%s354] sm:$0xff]
        %v1410 = vld [vmem:[%s354 + $0x8] sm:$0xff]
        %v1411 = vld [vmem:[#allocation8] sm:$0xff]
        %v1413 = vsel %vm362, %v1409, 0
        %v1416 = vsel %vm362, %v1410, 0
        %1418 = vmatprep.subr.mxu0 0.0
        %v1419 = vand.u32 %v1411, 4294901760
        %1420 = vmatpush1.msra.mxu0 %v1419
        %1421 = vmatprep.subr.mxu0 0.0
        %1422 = vmatpush1.msra.mxu0 0.0
        %1423 = vmatprep.subr.mxu0 0.0
        %1424 = vmatpush1.msra.mxu0 0.0
        %1425 = vmatprep.subr.mxu0 0.0
        %1426 = vmatpush1.msra.mxu0 0.0
        %1427 = vmatprep.subr.mxu0 0.0
        %1428 = vmatpush1.msra.mxu0 0.0
        %1429 = vmatprep.subr.mxu0 0.0
        %1430 = vmatpush1.msra.mxu0 0.0
        %1431 = vmatprep.subr.mxu0 0.0
        %1432 = vmatpush1.msra.mxu0 0.0
        %1433 = vmatprep.subr.mxu0 0.0
        %1434 = vmatpush1.msra.mxu0 0.0
        %1435 = vmatprep.subr.mxu0 0.0
        %1436 = vmatpush1.msra.mxu0 0.0
        %1437 = vmatprep.subr.mxu0 0.0
        %1438 = vmatpush1.msra.mxu0 0.0
        %1439 = vmatprep.subr.mxu0 0.0
        %1440 = vmatpush1.msra.mxu0 0.0
        %1441 = vmatprep.subr.mxu0 0.0
        %1442 = vmatpush1.msra.mxu0 0.0
        %1443 = vmatprep.subr.mxu0 0.0
        %1444 = vmatpush1.msra.mxu0 0.0
        %1445 = vmatprep.subr.mxu0 0.0
        %1446 = vmatpush1.msra.mxu0 0.0
        %1447 = vmatprep.subr.mxu0 0.0
        %1448 = vmatpush1.msra.mxu0 0.0
        %1449 = vmatprep.subr.mxu0 0.0
        %1450 = vmatpush1.msra.mxu0 0.0
        %1451 = vmatprep.subr.mxu0 0.0
        %1452 = vmatpush1.msra.mxu0 0.0
        %1453 = vmatprep.subr.mxu0 0.0
        %1454 = vmatpush1.msra.mxu0 0.0
        %1455 = vmatprep.subr.mxu0 0.0
        %1456 = vmatpush1.msra.mxu0 0.0
        %1457 = vmatprep.subr.mxu0 0.0
        %1458 = vmatpush1.msra.mxu0 0.0
        %1459 = vmatprep.subr.mxu0 0.0
        %1460 = vmatpush1.msra.mxu0 0.0
        %1461 = vmatprep.subr.mxu0 0.0
        %1462 = vmatpush1.msra.mxu0 0.0
        %1463 = vmatprep.subr.mxu0 0.0
        %1464 = vmatpush1.msra.mxu0 0.0
        %1465 = vmatprep.subr.mxu0 0.0
        %1466 = vmatpush1.msra.mxu0 0.0
        %1467 = vmatprep.subr.mxu0 0.0
        %1468 = vmatpush1.msra.mxu0 0.0
        %1469 = vmatprep.subr.mxu0 0.0
        %1470 = vmatpush1.msra.mxu0 0.0
        %1471 = vmatprep.subr.mxu0 0.0
        %1472 = vmatpush1.msra.mxu0 0.0
        %1473 = vmatprep.subr.mxu0 0.0
        %1474 = vmatpush1.msra.mxu0 0.0
        %1475 = vmatprep.subr.mxu0 0.0
        %1476 = vmatpush1.msra.mxu0 0.0
        %1477 = vmatprep.subr.mxu0 0.0
        %1478 = vmatpush1.msra.mxu0 0.0
        %1479 = vmatprep.subr.mxu0 0.0
        %1480 = vmatpush1.msra.mxu0 0.0
        %1481 = vmatprep.subr.mxu0 0.0
        %1482 = vmatpush1.msra.mxu0 0.0
        %1483 = vmatprep.mubr.f32.mxu0 0.0
        %v1484 = vand.u32 %v1413, 4294901760
        %v1485 = vsub.f32 %v1413, %v1484
        %v1486 = vand.u32 %v1485, 4294901760
        %v1487 = vsub.f32 %v1485, %v1486
        %v1488 = vand.u32 %v1487, 4294901760
        %1489 = vmatmul.mubr.f32.gmra.mrb[0].mxu0 %v1488
        %v1490 = vpop.f32.mrb[0].mxu0
        %v1491 = vadd.f32 0.0, %v1490
        %v1492 = vpop.f32.mrb[0].mxu0
        %1493 = vmatprep.mubr.f32.mxu0 0.0
        %v1494 = vand.u32 %v1416, 4294901760
        %v1495 = vsub.f32 %v1416, %v1494
        %v1496 = vand.u32 %v1495, 4294901760
        %v1497 = vsub.f32 %v1495, %v1496
        %v1498 = vand.u32 %v1497, 4294901760
        %1499 = vmatmul.mubr.f32.gmra.mrb[0].mxu0 %v1498
        %v1500 = vpop.f32.mrb[0].mxu0
        %v1501 = vadd.f32 0.0, %v1500
        %v1502 = vpop.f32.mrb[0].mxu0
        %1503 = vdwg.mxu0
        %1504 = vmatprep.subr.mxu0 0.0
        %v1505 = vand.u32 %v1411, 4294901760
        %v1506 = vsub.f32 %v1411, %v1505
        %v1507 = vand.u32 %v1506, 4294901760
        %v1508 = vsub.f32 %v1506, %v1507
        %v1509 = vand.u32 %v1508, 4294901760
        %1510 = vmatpush1.msra.mxu0 %v1509
        %1511 = vmatprep.subr.mxu0 0.0
        %1512 = vmatpush1.msra.mxu0 0.0
        %1513 = vmatprep.subr.mxu0 0.0
        %1514 = vmatpush1.msra.mxu0 0.0
        %1515 = vmatprep.subr.mxu0 0.0
        %1516 = vmatpush1.msra.mxu0 0.0
        %1517 = vmatprep.subr.mxu0 0.0
        %1518 = vmatpush1.msra.mxu0 0.0
        %1519 = vmatprep.subr.mxu0 0.0
        %1520 = vmatpush1.msra.mxu0 0.0
        %1521 = vmatprep.subr.mxu0 0.0
        %1522 = vmatpush1.msra.mxu0 0.0
        %1523 = vmatprep.subr.mxu0 0.0
        %1524 = vmatpush1.msra.mxu0 0.0
        %1525 = vmatprep.subr.mxu0 0.0
        %1526 = vmatpush1.msra.mxu0 0.0
        %1527 = vmatprep.subr.mxu0 0.0
        %1528 = vmatpush1.msra.mxu0 0.0
        %1529 = vmatprep.subr.mxu0 0.0
        %1530 = vmatpush1.msra.mxu0 0.0
        %1531 = vmatprep.subr.mxu0 0.0
        %1532 = vmatpush1.msra.mxu0 0.0
        %1533 = vmatprep.subr.mxu0 0.0
        %1534 = vmatpush1.msra.mxu0 0.0
        %1535 = vmatprep.subr.mxu0 0.0
        %1536 = vmatpush1.msra.mxu0 0.0
        %1537 = vmatprep.subr.mxu0 0.0
        %1538 = vmatpush1.msra.mxu0 0.0
        %1539 = vmatprep.subr.mxu0 0.0
        %1540 = vmatpush1.msra.mxu0 0.0
        %1541 = vmatprep.subr.mxu0 0.0
        %1542 = vmatpush1.msra.mxu0 0.0
        %1543 = vmatprep.subr.mxu0 0.0
        %1544 = vmatpush1.msra.mxu0 0.0
        %1545 = vmatprep.subr.mxu0 0.0
        %1546 = vmatpush1.msra.mxu0 0.0
        %1547 = vmatprep.subr.mxu0 0.0
        %1548 = vmatpush1.msra.mxu0 0.0
        %1549 = vmatprep.subr.mxu0 0.0
        %1550 = vmatpush1.msra.mxu0 0.0
        %1551 = vmatprep.subr.mxu0 0.0
        %1552 = vmatpush1.msra.mxu0 0.0
        %1553 = vmatprep.subr.mxu0 0.0
        %1554 = vmatpush1.msra.mxu0 0.0
        %1555 = vmatprep.subr.mxu0 0.0
        %1556 = vmatpush1.msra.mxu0 0.0
        %1557 = vmatprep.subr.mxu0 0.0
        %1558 = vmatpush1.msra.mxu0 0.0
        %1559 = vmatprep.subr.mxu0 0.0
        %1560 = vmatpush1.msra.mxu0 0.0
        %1561 = vmatprep.subr.mxu0 0.0
        %1562 = vmatpush1.msra.mxu0 0.0
        %1563 = vmatprep.subr.mxu0 0.0
        %1564 = vmatpush1.msra.mxu0 0.0
        %1565 = vmatprep.subr.mxu0 0.0
        %1566 = vmatpush1.msra.mxu0 0.0
        %1567 = vmatprep.subr.mxu0 0.0
        %1568 = vmatpush1.msra.mxu0 0.0
        %1569 = vmatprep.subr.mxu0 0.0
        %1570 = vmatpush1.msra.mxu0 0.0
        %1571 = vmatprep.subr.mxu0 0.0
        %1572 = vmatpush1.msra.mxu0 0.0
        %1573 = vmatprep.mubr.f32.mxu0 0.0
        %v1574 = vand.u32 %v1413, 4294901760
        %1575 = vmatmul.mubr.f32.gmra.mrb[0].mxu0 %v1574
        %v1576 = vpop.f32.mrb[0].mxu0
        %v1577 = vadd.f32 %v1491, %v1576
        %v1578 = vpop.f32.mrb[0].mxu0
        %1579 = vmatprep.mubr.f32.mxu0 0.0
        %v1580 = vand.u32 %v1416, 4294901760
        %1581 = vmatmul.mubr.f32.gmra.mrb[0].mxu0 %v1580
        %v1582 = vpop.f32.mrb[0].mxu0
        %v1583 = vadd.f32 %v1501, %v1582
        %v1584 = vpop.f32.mrb[0].mxu0
        %1585 = vdwg.mxu0
        %1586 = vmatprep.subr.mxu0 0.0
        %v1587 = vand.u32 %v1411, 4294901760
        %v1588 = vsub.f32 %v1411, %v1587
        %1589 = vmatpush1.msra.mxu0 %v1588
        %1590 = vmatprep.subr.mxu0 0.0
        %1591 = vmatpush1.msra.mxu0 0.0
        %1592 = vmatprep.subr.mxu0 0.0
        %1593 = vmatpush1.msra.mxu0 0.0
        %1594 = vmatprep.subr.mxu0 0.0
        %1595 = vmatpush1.msra.mxu0 0.0
        %1596 = vmatprep.subr.mxu0 0.0
        %1597 = vmatpush1.msra.mxu0 0.0
        %1598 = vmatprep.subr.mxu0 0.0
        %1599 = vmatpush1.msra.mxu0 0.0
        %1600 = vmatprep.subr.mxu0 0.0
        %1601 = vmatpush1.msra.mxu0 0.0
        %1602 = vmatprep.subr.mxu0 0.0
        %1603 = vmatpush1.msra.mxu0 0.0
        %1604 = vmatprep.subr.mxu0 0.0
        %1605 = vmatpush1.msra.mxu0 0.0
        %1606 = vmatprep.subr.mxu0 0.0
        %1607 = vmatpush1.msra.mxu0 0.0
        %1608 = vmatprep.subr.mxu0 0.0
        %1609 = vmatpush1.msra.mxu0 0.0
        %1610 = vmatprep.subr.mxu0 0.0
        %1611 = vmatpush1.msra.mxu0 0.0
        %1612 = vmatprep.subr.mxu0 0.0
        %1613 = vmatpush1.msra.mxu0 0.0
        %1614 = vmatprep.subr.mxu0 0.0
        %1615 = vmatpush1.msra.mxu0 0.0
        %1616 = vmatprep.subr.mxu0 0.0
        %1617 = vmatpush1.msra.mxu0 0.0
        %1618 = vmatprep.subr.mxu0 0.0
        %1619 = vmatpush1.msra.mxu0 0.0
        %1620 = vmatprep.subr.mxu0 0.0
        %1621 = vmatpush1.msra.mxu0 0.0
        %1622 = vmatprep.subr.mxu0 0.0
        %1623 = vmatpush1.msra.mxu0 0.0
        %1624 = vmatprep.subr.mxu0 0.0
        %1625 = vmatpush1.msra.mxu0 0.0
        %1626 = vmatprep.subr.mxu0 0.0
        %1627 = vmatpush1.msra.mxu0 0.0
        %1628 = vmatprep.subr.mxu0 0.0
        %1629 = vmatpush1.msra.mxu0 0.0
        %1630 = vmatprep.subr.mxu0 0.0
        %1631 = vmatpush1.msra.mxu0 0.0
        %1632 = vmatprep.subr.mxu0 0.0
        %1633 = vmatpush1.msra.mxu0 0.0
        %1634 = vmatprep.subr.mxu0 0.0
        %1635 = vmatpush1.msra.mxu0 0.0
        %1636 = vmatprep.subr.mxu0 0.0
        %1637 = vmatpush1.msra.mxu0 0.0
        %1638 = vmatprep.subr.mxu0 0.0
        %1639 = vmatpush1.msra.mxu0 0.0
        %1640 = vmatprep.subr.mxu0 0.0
        %1641 = vmatpush1.msra.mxu0 0.0
        %1642 = vmatprep.subr.mxu0 0.0
        %1643 = vmatpush1.msra.mxu0 0.0
        %1644 = vmatprep.subr.mxu0 0.0
        %1645 = vmatpush1.msra.mxu0 0.0
        %1646 = vmatprep.subr.mxu0 0.0
        %1647 = vmatpush1.msra.mxu0 0.0
        %1648 = vmatprep.subr.mxu0 0.0
        %1649 = vmatpush1.msra.mxu0 0.0
        %1650 = vmatprep.subr.mxu0 0.0
        %1651 = vmatpush1.msra.mxu0 0.0
        %1652 = vmatprep.mubr.f32.mxu0 0.0
        %v1653 = vand.u32 %v1413, 4294901760
        %v1654 = vsub.f32 %v1413, %v1653
        %1655 = vmatmul.mubr.f32.gmra.mrb[0].mxu0 %v1654
        %v1656 = vpop.f32.mrb[0].mxu0
        %v1657 = vadd.f32 %v1577, %v1656
        %v1658 = vpop.f32.mrb[0].mxu0
        %1659 = vmatprep.mubr.f32.mxu0 0.0
        %v1660 = vand.u32 %v1416, 4294901760
        %v1661 = vsub.f32 %v1416, %v1660
        %1662 = vmatmul.mubr.f32.gmra.mrb[0].mxu0 %v1661
        %v1663 = vpop.f32.mrb[0].mxu0
        %v1664 = vadd.f32 %v1583, %v1663
        %v1665 = vpop.f32.mrb[0].mxu0
        %1666 = vdwg.mxu0
        %1667 = vmatprep.subr.mxu0 0.0
        %v1668 = vand.u32 %v1411, 4294901760
        %1669 = vmatpush1.msra.mxu0 %v1668
        %1670 = vmatprep.subr.mxu0 0.0
        %1671 = vmatpush1.msra.mxu0 0.0
        %1672 = vmatprep.subr.mxu0 0.0
        %1673 = vmatpush1.msra.mxu0 0.0
        %1674 = vmatprep.subr.mxu0 0.0
        %1675 = vmatpush1.msra.mxu0 0.0
        %1676 = vmatprep.subr.mxu0 0.0
        %1677 = vmatpush1.msra.mxu0 0.0
        %1678 = vmatprep.subr.mxu0 0.0
        %1679 = vmatpush1.msra.mxu0 0.0
        %1680 = vmatprep.subr.mxu0 0.0
        %1681 = vmatpush1.msra.mxu0 0.0
        %1682 = vmatprep.subr.mxu0 0.0
        %1683 = vmatpush1.msra.mxu0 0.0
        %1684 = vmatprep.subr.mxu0 0.0
        %1685 = vmatpush1.msra.mxu0 0.0
        %1686 = vmatprep.subr.mxu0 0.0
        %1687 = vmatpush1.msra.mxu0 0.0
        %1688 = vmatprep.subr.mxu0 0.0
        %1689 = vmatpush1.msra.mxu0 0.0
        %1690 = vmatprep.subr.mxu0 0.0
        %1691 = vmatpush1.msra.mxu0 0.0
        %1692 = vmatprep.subr.mxu0 0.0
        %1693 = vmatpush1.msra.mxu0 0.0
        %1694 = vmatprep.subr.mxu0 0.0
        %1695 = vmatpush1.msra.mxu0 0.0
        %1696 = vmatprep.subr.mxu0 0.0
        %1697 = vmatpush1.msra.mxu0 0.0
        %1698 = vmatprep.subr.mxu0 0.0
        %1699 = vmatpush1.msra.mxu0 0.0
        %1700 = vmatprep.subr.mxu0 0.0
        %1701 = vmatpush1.msra.mxu0 0.0
        %1702 = vmatprep.subr.mxu0 0.0
        %1703 = vmatpush1.msra.mxu0 0.0
        %1704 = vmatprep.subr.mxu0 0.0
        %1705 = vmatpush1.msra.mxu0 0.0
        %1706 = vmatprep.subr.mxu0 0.0
        %1707 = vmatpush1.msra.mxu0 0.0
        %1708 = vmatprep.subr.mxu0 0.0
        %1709 = vmatpush1.msra.mxu0 0.0
        %1710 = vmatprep.subr.mxu0 0.0
        %1711 = vmatpush1.msra.mxu0 0.0
        %1712 = vmatprep.subr.mxu0 0.0
        %1713 = vmatpush1.msra.mxu0 0.0
        %1714 = vmatprep.subr.mxu0 0.0
        %1715 = vmatpush1.msra.mxu0 0.0
        %1716 = vmatprep.subr.mxu0 0.0
        %1717 = vmatpush1.msra.mxu0 0.0
        %1718 = vmatprep.subr.mxu0 0.0
        %1719 = vmatpush1.msra.mxu0 0.0
        %1720 = vmatprep.subr.mxu0 0.0
        %1721 = vmatpush1.msra.mxu0 0.0
        %1722 = vmatprep.subr.mxu0 0.0
        %1723 = vmatpush1.msra.mxu0 0.0
        %1724 = vmatprep.subr.mxu0 0.0
        %1725 = vmatpush1.msra.mxu0 0.0
        %1726 = vmatprep.subr.mxu0 0.0
        %1727 = vmatpush1.msra.mxu0 0.0
        %1728 = vmatprep.subr.mxu0 0.0
        %1729 = vmatpush1.msra.mxu0 0.0
        %1730 = vmatprep.subr.mxu0 0.0
        %1731 = vmatpush1.msra.mxu0 0.0
        %1732 = vmatprep.mubr.f32.mxu0 0.0
        %v1733 = vand.u32 %v1413, 4294901760
        %v1734 = vsub.f32 %v1413, %v1733
        %v1735 = vand.u32 %v1734, 4294901760
        %1736 = vmatmul.mubr.f32.gmra.mrb[0].mxu0 %v1735
        %v1737 = vpop.f32.mrb[0].mxu0
        %v1738 = vadd.f32 %v1657, %v1737
        %v1739 = vpop.f32.mrb[0].mxu0
        %1740 = vmatprep.mubr.f32.mxu0 0.0
        %v1741 = vand.u32 %v1416, 4294901760
        %v1742 = vsub.f32 %v1416, %v1741
        %v1743 = vand.u32 %v1742, 4294901760
        %1744 = vmatmul.mubr.f32.gmra.mrb[0].mxu0 %v1743
        %v1745 = vpop.f32.mrb[0].mxu0
        %v1746 = vadd.f32 %v1664, %v1745
        %v1747 = vpop.f32.mrb[0].mxu0
        %1748 = vdwg.mxu0
        %1749 = vmatprep.subr.mxu0 0.0
        %v1750 = vand.u32 %v1411, 4294901760
        %v1751 = vsub.f32 %v1411, %v1750
        %v1752 = vand.u32 %v1751, 4294901760
        %1753 = vmatpush1.msra.mxu0 %v1752
        %1754 = vmatprep.subr.mxu0 0.0
        %1755 = vmatpush1.msra.mxu0 0.0
        %1756 = vmatprep.subr.mxu0 0.0
        %1757 = vmatpush1.msra.mxu0 0.0
        %1758 = vmatprep.subr.mxu0 0.0
        %1759 = vmatpush1.msra.mxu0 0.0
        %1760 = vmatprep.subr.mxu0 0.0
        %1761 = vmatpush1.msra.mxu0 0.0
        %1762 = vmatprep.subr.mxu0 0.0
        %1763 = vmatpush1.msra.mxu0 0.0
        %1764 = vmatprep.subr.mxu0 0.0
        %1765 = vmatpush1.msra.mxu0 0.0
        %1766 = vmatprep.subr.mxu0 0.0
        %1767 = vmatpush1.msra.mxu0 0.0
        %1768 = vmatprep.subr.mxu0 0.0
        %1769 = vmatpush1.msra.mxu0 0.0
        %1770 = vmatprep.subr.mxu0 0.0
        %1771 = vmatpush1.msra.mxu0 0.0
        %1772 = vmatprep.subr.mxu0 0.0
        %1773 = vmatpush1.msra.mxu0 0.0
        %1774 = vmatprep.subr.mxu0 0.0
        %1775 = vmatpush1.msra.mxu0 0.0
        %1776 = vmatprep.subr.mxu0 0.0
        %1777 = vmatpush1.msra.mxu0 0.0
        %1778 = vmatprep.subr.mxu0 0.0
        %1779 = vmatpush1.msra.mxu0 0.0
        %1780 = vmatprep.subr.mxu0 0.0
        %1781 = vmatpush1.msra.mxu0 0.0
        %1782 = vmatprep.subr.mxu0 0.0
        %1783 = vmatpush1.msra.mxu0 0.0
        %1784 = vmatprep.subr.mxu0 0.0
        %1785 = vmatpush1.msra.mxu0 0.0
        %1786 = vmatprep.subr.mxu0 0.0
        %1787 = vmatpush1.msra.mxu0 0.0
        %1788 = vmatprep.subr.mxu0 0.0
        %1789 = vmatpush1.msra.mxu0 0.0
        %1790 = vmatprep.subr.mxu0 0.0
        %1791 = vmatpush1.msra.mxu0 0.0
        %1792 = vmatprep.subr.mxu0 0.0
        %1793 = vmatpush1.msra.mxu0 0.0
        %1794 = vmatprep.subr.mxu0 0.0
        %1795 = vmatpush1.msra.mxu0 0.0
        %1796 = vmatprep.subr.mxu0 0.0
        %1797 = vmatpush1.msra.mxu0 0.0
        %1798 = vmatprep.subr.mxu0 0.0
        %1799 = vmatpush1.msra.mxu0 0.0
        %1800 = vmatprep.subr.mxu0 0.0
        %1801 = vmatpush1.msra.mxu0 0.0
        %1802 = vmatprep.subr.mxu0 0.0
        %1803 = vmatpush1.msra.mxu0 0.0
        %1804 = vmatprep.subr.mxu0 0.0
        %1805 = vmatpush1.msra.mxu0 0.0
        %1806 = vmatprep.subr.mxu0 0.0
        %1807 = vmatpush1.msra.mxu0 0.0
        %1808 = vmatprep.subr.mxu0 0.0
        %1809 = vmatpush1.msra.mxu0 0.0
        %1810 = vmatprep.subr.mxu0 0.0
        %1811 = vmatpush1.msra.mxu0 0.0
        %1812 = vmatprep.subr.mxu0 0.0
        %1813 = vmatpush1.msra.mxu0 0.0
        %1814 = vmatprep.subr.mxu0 0.0
        %1815 = vmatpush1.msra.mxu0 0.0
        %1816 = vmatprep.mubr.f32.mxu0 0.0
        %v1817 = vand.u32 %v1413, 4294901760
        %1818 = vmatmul.mubr.f32.gmra.mrb[0].mxu0 %v1817
        %v1819 = vpop.f32.mrb[0].mxu0
        %v1820 = vadd.f32 %v1738, %v1819
        %v1821 = vpop.f32.mrb[0].mxu0
        %1822 = vmatprep.mubr.f32.mxu0 0.0
        %v1823 = vand.u32 %v1416, 4294901760
        %1824 = vmatmul.mubr.f32.gmra.mrb[0].mxu0 %v1823
        %v1825 = vpop.f32.mrb[0].mxu0
        %v1826 = vadd.f32 %v1746, %v1825
        %v1827 = vpop.f32.mrb[0].mxu0
        %1828 = vdwg.mxu0
        %1829 = vmatprep.subr.mxu0 0.0
        %v1830 = vand.u32 %v1411, 4294901760
        %1831 = vmatpush1.msra.mxu0 %v1830
        %1832 = vmatprep.subr.mxu0 0.0
        %1833 = vmatpush1.msra.mxu0 0.0
        %1834 = vmatprep.subr.mxu0 0.0
        %1835 = vmatpush1.msra.mxu0 0.0
        %1836 = vmatprep.subr.mxu0 0.0
        %1837 = vmatpush1.msra.mxu0 0.0
        %1838 = vmatprep.subr.mxu0 0.0
        %1839 = vmatpush1.msra.mxu0 0.0
        %1840 = vmatprep.subr.mxu0 0.0
        %1841 = vmatpush1.msra.mxu0 0.0
        %1842 = vmatprep.subr.mxu0 0.0
        %1843 = vmatpush1.msra.mxu0 0.0
        %1844 = vmatprep.subr.mxu0 0.0
        %1845 = vmatpush1.msra.mxu0 0.0
        %1846 = vmatprep.subr.mxu0 0.0
        %1847 = vmatpush1.msra.mxu0 0.0
        %1848 = vmatprep.subr.mxu0 0.0
        %1849 = vmatpush1.msra.mxu0 0.0
        %1850 = vmatprep.subr.mxu0 0.0
        %1851 = vmatpush1.msra.mxu0 0.0
        %1852 = vmatprep.subr.mxu0 0.0
        %1853 = vmatpush1.msra.mxu0 0.0
        %1854 = vmatprep.subr.mxu0 0.0
        %1855 = vmatpush1.msra.mxu0 0.0
        %1856 = vmatprep.subr.mxu0 0.0
        %1857 = vmatpush1.msra.mxu0 0.0
        %1858 = vmatprep.subr.mxu0 0.0
        %1859 = vmatpush1.msra.mxu0 0.0
        %1860 = vmatprep.subr.mxu0 0.0
        %1861 = vmatpush1.msra.mxu0 0.0
        %1862 = vmatprep.subr.mxu0 0.0
        %1863 = vmatpush1.msra.mxu0 0.0
        %1864 = vmatprep.subr.mxu0 0.0
        %1865 = vmatpush1.msra.mxu0 0.0
        %1866 = vmatprep.subr.mxu0 0.0
        %1867 = vmatpush1.msra.mxu0 0.0
        %1868 = vmatprep.subr.mxu0 0.0
        %1869 = vmatpush1.msra.mxu0 0.0
        %1870 = vmatprep.subr.mxu0 0.0
        %1871 = vmatpush1.msra.mxu0 0.0
        %1872 = vmatprep.subr.mxu0 0.0
        %1873 = vmatpush1.msra.mxu0 0.0
        %1874 = vmatprep.subr.mxu0 0.0
        %1875 = vmatpush1.msra.mxu0 0.0
        %1876 = vmatprep.subr.mxu0 0.0
        %1877 = vmatpush1.msra.mxu0 0.0
        %1878 = vmatprep.subr.mxu0 0.0
        %1879 = vmatpush1.msra.mxu0 0.0
        %1880 = vmatprep.subr.mxu0 0.0
        %1881 = vmatpush1.msra.mxu0 0.0
        %1882 = vmatprep.subr.mxu0 0.0
        %1883 = vmatpush1.msra.mxu0 0.0
        %1884 = vmatprep.subr.mxu0 0.0
        %1885 = vmatpush1.msra.mxu0 0.0
        %1886 = vmatprep.subr.mxu0 0.0
        %1887 = vmatpush1.msra.mxu0 0.0
        %1888 = vmatprep.subr.mxu0 0.0
        %1889 = vmatpush1.msra.mxu0 0.0
        %1890 = vmatprep.subr.mxu0 0.0
        %1891 = vmatpush1.msra.mxu0 0.0
        %1892 = vmatprep.subr.mxu0 0.0
        %1893 = vmatpush1.msra.mxu0 0.0
        %1894 = vmatprep.mubr.f32.mxu0 0.0
        %v1895 = vand.u32 %v1413, 4294901760
        %1896 = vmatmul.mubr.f32.gmra.mrb[0].mxu0 %v1895
        %v1897 = vpop.f32.mrb[0].mxu0
        %v1898 = vadd.f32 %v1820, %v1897
        %v1899 = vpop.f32.mrb[0].mxu0
        %1900 = vmatprep.mubr.f32.mxu0 0.0
        %v1901 = vand.u32 %v1416, 4294901760
        %1902 = vmatmul.mubr.f32.gmra.mrb[0].mxu0 %v1901
        %v1903 = vpop.f32.mrb[0].mxu0
        %v1904 = vadd.f32 %v1826, %v1903
        %v1905 = vpop.f32.mrb[0].mxu0
        %1906 = vdwg.mxu0
        %v1907 = vadd.f32 %v1407, %v1898
        %v1908 = vadd.f32 %v1408, %v1904
        %1909 = vst [vmem:[%s343] sm:$0xff] %v1907
        %1910 = vst [vmem:[%s343 + $0x8] sm:$0xff] %v1908
        %s1911 = sand.u32 %s189, 1
        %s1912 = scalar_lea.sflag [#allocation4], %s1911
        %s1913 = sand.u32 %s189, 1
        %s1914 = smul.addr %s1913, 16
        %s1915 = scalar_lea.vmem [#allocation10], %s1914
        // Predicated region
        $region65: #{tpu_custom_call.1} parent=47 // pred_check
          %p1916 = pneg %p199
        $region66: #{tpu_custom_call.1} parent=47 // pred_check_branch
          %1918 = sbr.rel (%p1916) target = $region68
        $region67: #{tpu_custom_call.1} parent=47 // pred_region
          %s1919 = smul.u32 2, %s24
          %s1921 = ssub.s32 256, 256
          %1922 = vsyncadd %s1912, %s1921
          %s1923 = smul.addr %s1919, 128
          %s1924 = scalar_lea.hbm %s7, %s1923
          %s1925 = sshll.u32 %s1915, 4
          %s1926 = int_to_ptr.vmem [resolvable:$true] %s1925
          %1931 = dma.vmem_to_hbm [thread:$0]  %s1926, 256, %s1924, %s1912, 128, 128, 8
        $region68: #{tpu_custom_call.1} parent=47 // pred_fallthru
          _
      $region48: #{tpu_custom_call.1} parent=5 // pred_fallthru
        _
      %p1932 = scmp.le.s32.totalorder 2, %s19
      // Predicated region
      $region69: #{tpu_custom_call.1} parent=5 // pred_check
        %p1933 = pneg %p1932
      $region70: #{tpu_custom_call.1} parent=5 // pred_check_branch
        %1935 = sbr.rel (%p1933) target = $region72
      $region71: #{tpu_custom_call.1} parent=5 // pred_region
        %s1936 = ssub.s32 %s19, 2
        // Predicated region
        $region73: #{tpu_custom_call.1} parent=71 // pred_check
          %p1937 = pneg %p205
        $region74: #{tpu_custom_call.1} parent=71 // pred_check_branch
          %1939 = sbr.rel (%p1937) target = $region76
        $region75: #{tpu_custom_call.1} parent=71 // pred_region
          %s1940 = sand.u32 %s190, 1
          %s1941 = scalar_lea.sflag [#allocation4], %s1940
          %s1942 = sand.u32 %s190, 1
          %s1943 = smul.addr %s1942, 16
          %s1944 = scalar_lea.vmem [#allocation10], %s1943
          %1945 = dma.done %s1941, 256
        $region76: #{tpu_custom_call.1} parent=71 // pred_fallthru
          _
      $region72: #{tpu_custom_call.1} parent=5 // pred_fallthru
        _
    $region6: #{tpu_custom_call.1} parent=1 // loop_footer
      %s23 = sadd.s32 1, %s19
    $region7: #{tpu_custom_call.1} parent=1 // loop_footer_branch
      %18 = sbr.rel target = $region3
    $region8: #{tpu_custom_call.1} parent=1 // loop_exit
      _
    %1946 = vsyncpa [#allocation3], 1
    %s1947 = scalar_lea.sflag [#allocation3], 1
    %1948 = vsyncpa %s1947, 1
    %1949 = vsyncpa [#allocation6], 1
    %1950 = vsyncpa [#allocation9], 1
    %1951 = vsyncpa [#allocation4], 1
    %s1952 = scalar_lea.sflag [#allocation4], 1
    %1953 = vsyncpa %s1952, 1

</llo_original>
